<compile_context>
chip_gen: v7x
topology: tpu7x:2x2x1
jax: 0.10.0
libtpu: 0.0.40
codegen_flags: <defaults>
</compile_context>

<pallas_src>
import functools

import jax
import jax.numpy as jnp
from jax.experimental import pallas as pl
from jax.experimental.pallas import tpu as pltpu

MESSAGE_SIZE = 32
MESSAGE_PASSES = 3
ATOM_LIST = ['H', 'C', 'N', 'O', 'F', 'P', 'S', 'Cl',
             'Br', 'I', 'B', 'Si', 'Se', 'Sn', 'Pd', 'K']   # F = 16
B = 2          # batch (reactions)
N_ATOMS = 8    # atoms per molecule (same max size used for all 4 reagents)


# ----------------------------------------------------------------------------
# Slab layouts (every block starts at an 8-row sublane boundary)
# ----------------------------------------------------------------------------
def _rup8(x):
  return (x + 7) // 8 * 8


def _slab_a_offsets(n_feats, msg_size):
  """Layout of the [*, M] MPNN-parameter slab."""
  o_emb = 0                               # w_emb      [F, M]
  o_msg_h = _rup8(n_feats)                # w_msg rows 0:M   [M, M]
  o_msg_m = o_msg_h + _rup8(msg_size)     # w_msg rows M:2M  [M, M]
  o_bemb = o_msg_m + _rup8(msg_size)      # b_emb      [1, M]
  o_bmsg = o_bemb + 8                     # b_msg      [1, M]
  total = o_bmsg + 8
  return o_emb, o_msg_h, o_msg_m, o_bemb, o_bmsg, total


def _slab_b_offsets(msg_size):
  """Layout of the [*, 4M] yield-head slab."""
  o_w1 = 0                                # W1   [4M, 4M]
  o_b1 = _rup8(4 * msg_size)              # b1   [1, 4M]
  o_w2 = o_b1 + 8                         # w2^T [1, 4M]
  o_b2 = o_w2 + 8                         # b2   scalar at col 0
  total = o_b2 + 8
  return o_w1, o_b1, o_w2, o_b2, total


# ----------------------------------------------------------------------------
# Pallas kernel: fused MPNN over the block-diagonal graph + reaction MLP + abs
# ----------------------------------------------------------------------------
def buchwald_kernel(n_passes, batch, n_feats, msg_size,
                    adj_ref,      # [R, R]      block-diagonal over 4*B graphs
                    feat_ref,     # [R, F]      stacked one-hot features
                    sseg_ref,     # [4*BP, R]   0/1 readout selector (row r*BP+b)
                    slab_a_ref,   # [96, M]     w_emb | w_msg_h | w_msg_m | b_emb | b_msg
                    slab_b_ref,   # [152, 4M]   W1 | b1 | w2^T | b2
                    out_ref):     # [B, 1]
  M = msg_size
  F = n_feats
  o_emb, o_msg_h, o_msg_m, o_bemb, o_bmsg, _ = _slab_a_offsets(F, M)
  o_w1, o_b1, o_w2, o_b2, _ = _slab_b_offsets(M)
  BP = sseg_ref.shape[0] // 4            # 8-row padded per-reagent batch

  # Atom embedding: relu(feat @ W_emb + b_emb).  Bias stays a [1, M]
  # sublane-broadcast inside the add (no materialized [R, M] copy).
  h = jnp.maximum(
      jnp.dot(feat_ref[...], slab_a_ref[o_emb:o_emb + F, :],
              preferred_element_type=jnp.float32)
      + slab_a_ref[o_bemb:o_bemb + 1, :], 0.0)

  # Message passing on the fused block-diagonal graph (exact: off-diagonal
  # zeros contribute 0.0).  Adjacency / weight tiles are re-read from VMEM
  # each unrolled pass instead of being pinned in vregs across the kernel.
  for _ in range(n_passes):
    m = jnp.dot(adj_ref[...], h, preferred_element_type=jnp.float32)   # [R, M]
    h = jnp.maximum(
        jnp.dot(h, slab_a_ref[o_msg_h:o_msg_h + M, :],
                preferred_element_type=jnp.float32)
        + jnp.dot(m, slab_a_ref[o_msg_m:o_msg_m + M, :],
                  preferred_element_type=jnp.float32)
        + slab_a_ref[o_bmsg:o_bmsg + 1, :], 0.0)

  # Readout: ONE fused selector matmul gives all 4*B per-graph atom sums
  # (row r*BP + b); the first yield-head Linear is folded in through the 4
  # row blocks of W1:  cat([e_hal, e_lig, e_bas, e_add]) @ W1
  #                  = sum_r e_r @ W1[r*M:(r+1)*M, :]     (exact).
  emb = jnp.dot(sseg_ref[...], h, preferred_element_type=jnp.float32)  # [4BP, M]
  hid = jnp.dot(emb[0:BP, :], slab_b_ref[o_w1:o_w1 + M, :],
                preferred_element_type=jnp.float32)
  for r in range(1, 4):
    hid = hid + jnp.dot(emb[r * BP:(r + 1) * BP, :],
                        slab_b_ref[o_w1 + r * M:o_w1 + (r + 1) * M, :],
                        preferred_element_type=jnp.float32)
  hid = jnp.maximum(hid + slab_b_ref[o_b1:o_b1 + 1, :], 0.0)           # [BP, 4M]

  # Final Linear(4M, 1) as a lane reduction against w2^T, then abs.
  # (out stays [B, 1]; lane-dense output only pays off once B grows.)
  y = (jnp.sum(hid * slab_b_ref[o_w2:o_w2 + 1, :], axis=-1, keepdims=True)
       + slab_b_ref[o_b2:o_b2 + 1, 0:1])                               # [BP, 1]
  out_ref[...] = jnp.abs(y[0:batch, :])                                # [B, 1]


# ----------------------------------------------------------------------------
# One-time (input-independent) packing: parameter slabs + readout selector
# ----------------------------------------------------------------------------
def pack_params(params):
  (w_emb, b_emb, w_msg, b_msg, w1, b1, w2, b2) = params
  F, M = w_emb.shape
  o_emb, o_msg_h, o_msg_m, o_bemb, o_bmsg, tot_a = _slab_a_offsets(F, M)
  slab_a = jnp.zeros((tot_a, M), jnp.float32)
  slab_a = slab_a.at[o_emb:o_emb + F, :].set(w_emb)
  slab_a = slab_a.at[o_msg_h:o_msg_h + M, :].set(w_msg[:M, :])
  slab_a = slab_a.at[o_msg_m:o_msg_m + M, :].set(w_msg[M:, :])
  slab_a = slab_a.at[o_bemb, :].set(b_emb[0])
  slab_a = slab_a.at[o_bmsg, :].set(b_msg[0])

  o_w1, o_b1, o_w2, o_b2, tot_b = _slab_b_offsets(M)
  slab_b = jnp.zeros((tot_b, 4 * M), jnp.float32)
  slab_b = slab_b.at[o_w1:o_w1 + 4 * M, :].set(w1)
  slab_b = slab_b.at[o_b1, :].set(b1[0])
  slab_b = slab_b.at[o_w2, :].set(w2[:, 0])
  slab_b = slab_b.at[o_b2, 0].set(b2[0, 0])
  return slab_a, slab_b


def make_selector(batch, n_atoms):
  """0/1 selector: row r*BP + b sums the atoms of graph g = r*batch + b."""
  BP = max(8, _rup8(batch))
  R = 4 * batch * n_atoms
  row_graph = jnp.arange(R) // n_atoms                     # graph id per node
  r_idx = jnp.arange(4)[:, None]                           # reagent
  b_idx = jnp.arange(BP)[None, :]                          # padded batch slot
  tgt = r_idx * batch + b_idx
  valid = b_idx < batch                                    # mask padding rows
  sel = (row_graph[None, None, :] == tgt[:, :, None]) & valid[:, :, None]
  return sel.reshape(4 * BP, R).astype(jnp.float32)


# ----------------------------------------------------------------------------
# Per-call wrapper: stack graphs, build block-diagonal adjacency, call Pallas
# ----------------------------------------------------------------------------
@jax.jit
def buchwald_forward(inputs, sseg, slab_a, slab_b):
  (hal_a, hal_f, lig_a, lig_f, bas_a, bas_f, add_a, add_f) = inputs
  Bq, N = hal_a.shape[0], hal_a.shape[1]
  F = hal_f.shape[-1]
  M = slab_a.shape[1]
  G = 4 * Bq          # total graphs (4 reagents x batch), graph g = r*B + b
  R = G * N           # total fused nodes

  adj = jnp.stack([hal_a, lig_a, bas_a, add_a], 0).reshape(G, N, N)
  feat = jnp.stack([hal_f, lig_f, bas_f, add_f], 0).reshape(G, N, F)

  # Block-diagonal adjacency [R, R] with exact zeros off the diagonal blocks;
  # single broadcast-multiply + reshape (no [G,G,N,N] transpose).
  blk = jnp.eye(G, dtype=adj.dtype)
  adj_big = (adj[:, :, None, :] * blk[:, None, :, None]).reshape(R, R)
  feat_big = feat.reshape(R, F)

  kernel = functools.partial(buchwald_kernel, MESSAGE_PASSES, Bq, F, M)
  args = (adj_big, feat_big, sseg, slab_a, slab_b)
  out = pl.pallas_call(
      kernel,
      out_shape=jax.ShapeDtypeStruct((Bq, 1), jnp.float32),
      in_specs=[pl.BlockSpec(memory_space=pltpu.MemorySpace.VMEM)] * len(args),
      out_specs=pl.BlockSpec(memory_space=pltpu.MemorySpace.VMEM),
  )(*args)
  return out.reshape(-1)    # predicted_yield.view([-1])


# ----------------------------------------------------------------------------
# Deterministic parameter / input construction + pure-JAX reference
# ----------------------------------------------------------------------------
def init_params(key, msg_size, n_atom_feats):
  M = msg_size
  ks = jax.random.split(key, 4)

  def lin(k, fan_in, w_shape, b_shape):
    bound = 1.0 / jnp.sqrt(jnp.float32(fan_in))
    kw, kb = jax.random.split(k)
    w = jax.random.uniform(kw, w_shape, jnp.float32, -bound, bound)
    b = jax.random.uniform(kb, b_shape, jnp.float32, -bound, bound)
    return w, b

  w_emb, b_emb = lin(ks[0], n_atom_feats, (n_atom_feats, M), (1, M))
  w_msg, b_msg = lin(ks[1], 2 * M, (2 * M, M), (1, M))
  w1, b1 = lin(ks[2], 4 * M, (4 * M, 4 * M), (1, 4 * M))
  w2, b2 = lin(ks[3], 4 * M, (4 * M, 1), (1, 1))
  return (w_emb, b_emb, w_msg, b_msg, w1, b1, w2, b2)


def make_graph(key, batch, n, f):
  ka, kf = jax.random.split(key)
  a = (jax.random.uniform(ka, (batch, n, n)) < 0.35).astype(jnp.float32)
  a = jnp.maximum(a, jnp.transpose(a, (0, 2, 1)))      # symmetric
  a = a * (1.0 - jnp.eye(n, dtype=jnp.float32))        # no self loops
  types = jax.random.randint(kf, (batch, n), 0, f)
  feat = jax.nn.one_hot(types, f, dtype=jnp.float32)
  return a, feat


def reference_forward(inputs, params):
  (hal_a, hal_f, lig_a, lig_f, bas_a, bas_f, add_a, add_f) = inputs
  (w_emb, b_emb, w_msg, b_msg, w1, b1, w2, b2) = params
  M = MESSAGE_SIZE

  def mpnn(a, f):
    Bq, Nq, Fq = f.shape
    h = jax.nn.relu(f.reshape(Bq * Nq, Fq) @ w_emb + b_emb).reshape(Bq, Nq, M)
    for _ in range(MESSAGE_PASSES):
      m = jnp.einsum('bij,bjm->bim', a, h)
      cat = jnp.concatenate([h, m], axis=-1)
      h = jax.nn.relu(cat.reshape(Bq * Nq, 2 * M) @ w_msg
                      + b_msg).reshape(Bq, Nq, M)
    return h.sum(axis=1)

  rxn = jnp.concatenate([mpnn(hal_a, hal_f), mpnn(lig_a, lig_f),
                         mpnn(bas_a, bas_f), mpnn(add_a, add_f)], axis=1)
  hid = jax.nn.relu(rxn @ w1 + b1)
  return jnp.abs(hid @ w2 + b2).reshape(-1)


if __name__ == "__main__":
  key = jax.random.PRNGKey(0)
  k_par, k_hal, k_lig, k_bas, k_add = jax.random.split(key, 5)

  F = len(ATOM_LIST)
  params = init_params(k_par, MESSAGE_SIZE, F)

  hal_a, hal_f = make_graph(k_hal, B, N_ATOMS, F)
  lig_a, lig_f = make_graph(k_lig, B, N_ATOMS, F)
  bas_a, bas_f = make_graph(k_bas, B, N_ATOMS, F)
  add_a, add_f = make_graph(k_add, B, N_ATOMS, F)
  inputs = (hal_a, hal_f, lig_a, lig_f, bas_a, bas_f, add_a, add_f)

  # Input-independent packing done ONCE, outside the per-call path.
  slab_a, slab_b = pack_params(params)
  sseg = make_selector(B, N_ATOMS)

  out = jax.block_until_ready(buchwald_forward(inputs, sseg, slab_a, slab_b))
  ref = jax.block_until_ready(reference_forward(inputs, params))

  assert out.shape == (B,), out.shape
  assert jnp.allclose(out, ref, rtol=1e-3, atol=1e-4), (out, ref)
  print("KERNEL_OK")
</pallas_src>

<mosaic_0001>
module attributes {stable_mosaic.version = 11 : i64} {
  func.func @buchwald_kernel(%arg0: memref<64x64xf32, #tpu.memory_space<vmem>>, %arg1: memref<64x16xf32, #tpu.memory_space<vmem>>, %arg2: memref<32x64xf32, #tpu.memory_space<vmem>>, %arg3: memref<96x32xf32, #tpu.memory_space<vmem>>, %arg4: memref<152x128xf32, #tpu.memory_space<vmem>>, %arg5: memref<2x1xf32, #tpu.memory_space<vmem>>) attributes {dimension_semantics = [], scalar_prefetch = 0 : i64, scratch_operands = 0 : i64, tpu.core_type = #tpu.core_type<tc>} {
    %c0 = arith.constant 0 : index
    %c0_0 = arith.constant 0 : index
    %0 = vector.load %arg1[%c0, %c0_0] : memref<64x16xf32, #tpu.memory_space<vmem>>, vector<64x16xf32>
    %c0_1 = arith.constant 0 : index
    %c0_2 = arith.constant 0 : index
    %1 = vector.load %arg3[%c0_1, %c0_2] : memref<96x32xf32, #tpu.memory_space<vmem>>, vector<16x32xf32>
    %cst = arith.constant dense<0.000000e+00> : vector<64x32xf32>
    %2 = tpu.matmul %0, %1, %cst {dimension_numbers = #tpu.dot_dimension_numbers<[1], [0], [0], [1], [0, 0, 1, 1], [], []>} : vector<64x16xf32>, vector<16x32xf32>, vector<64x32xf32> -> vector<64x32xf32>
    %c80 = arith.constant 80 : index
    %c0_3 = arith.constant 0 : index
    %3 = vector.load %arg3[%c80, %c0_3] : memref<96x32xf32, #tpu.memory_space<vmem>>, vector<1x32xf32>
    %4 = vector.broadcast %3 : vector<1x32xf32> to vector<64x32xf32>
    %5 = arith.addf %2, %4 : vector<64x32xf32>
    %cst_4 = arith.constant 0.000000e+00 : f32
    %6 = vector.broadcast %cst_4 : f32 to vector<64x32xf32>
    %7 = arith.maximumf %5, %6 : vector<64x32xf32>
    %c0_5 = arith.constant 0 : index
    %c0_6 = arith.constant 0 : index
    %8 = vector.load %arg0[%c0_5, %c0_6] : memref<64x64xf32, #tpu.memory_space<vmem>>, vector<64x64xf32>
    %cst_7 = arith.constant dense<0.000000e+00> : vector<64x32xf32>
    %9 = tpu.matmul %8, %7, %cst_7 {dimension_numbers = #tpu.dot_dimension_numbers<[1], [0], [0], [1], [0, 0, 1, 1], [], []>} : vector<64x64xf32>, vector<64x32xf32>, vector<64x32xf32> -> vector<64x32xf32>
    %c16 = arith.constant 16 : index
    %c0_8 = arith.constant 0 : index
    %10 = vector.load %arg3[%c16, %c0_8] : memref<96x32xf32, #tpu.memory_space<vmem>>, vector<32x32xf32>
    %cst_9 = arith.constant dense<0.000000e+00> : vector<64x32xf32>
    %11 = tpu.matmul %7, %10, %cst_9 {dimension_numbers = #tpu.dot_dimension_numbers<[1], [0], [0], [1], [0, 0, 1, 1], [], []>} : vector<64x32xf32>, vector<32x32xf32>, vector<64x32xf32> -> vector<64x32xf32>
    %c48 = arith.constant 48 : index
    %c0_10 = arith.constant 0 : index
    %12 = vector.load %arg3[%c48, %c0_10] : memref<96x32xf32, #tpu.memory_space<vmem>>, vector<32x32xf32>
    %cst_11 = arith.constant dense<0.000000e+00> : vector<64x32xf32>
    %13 = tpu.matmul %9, %12, %cst_11 {dimension_numbers = #tpu.dot_dimension_numbers<[1], [0], [0], [1], [0, 0, 1, 1], [], []>} : vector<64x32xf32>, vector<32x32xf32>, vector<64x32xf32> -> vector<64x32xf32>
    %14 = arith.addf %11, %13 : vector<64x32xf32>
    %c88 = arith.constant 88 : index
    %c0_12 = arith.constant 0 : index
    %15 = vector.load %arg3[%c88, %c0_12] : memref<96x32xf32, #tpu.memory_space<vmem>>, vector<1x32xf32>
    %16 = vector.broadcast %15 : vector<1x32xf32> to vector<64x32xf32>
    %17 = arith.addf %14, %16 : vector<64x32xf32>
    %cst_13 = arith.constant 0.000000e+00 : f32
    %18 = vector.broadcast %cst_13 : f32 to vector<64x32xf32>
    %19 = arith.maximumf %17, %18 : vector<64x32xf32>
    %c0_14 = arith.constant 0 : index
    %c0_15 = arith.constant 0 : index
    %20 = vector.load %arg0[%c0_14, %c0_15] : memref<64x64xf32, #tpu.memory_space<vmem>>, vector<64x64xf32>
    %cst_16 = arith.constant dense<0.000000e+00> : vector<64x32xf32>
    %21 = tpu.matmul %20, %19, %cst_16 {dimension_numbers = #tpu.dot_dimension_numbers<[1], [0], [0], [1], [0, 0, 1, 1], [], []>} : vector<64x64xf32>, vector<64x32xf32>, vector<64x32xf32> -> vector<64x32xf32>
    %c16_17 = arith.constant 16 : index
    %c0_18 = arith.constant 0 : index
    %22 = vector.load %arg3[%c16_17, %c0_18] : memref<96x32xf32, #tpu.memory_space<vmem>>, vector<32x32xf32>
    %cst_19 = arith.constant dense<0.000000e+00> : vector<64x32xf32>
    %23 = tpu.matmul %19, %22, %cst_19 {dimension_numbers = #tpu.dot_dimension_numbers<[1], [0], [0], [1], [0, 0, 1, 1], [], []>} : vector<64x32xf32>, vector<32x32xf32>, vector<64x32xf32> -> vector<64x32xf32>
    %c48_20 = arith.constant 48 : index
    %c0_21 = arith.constant 0 : index
    %24 = vector.load %arg3[%c48_20, %c0_21] : memref<96x32xf32, #tpu.memory_space<vmem>>, vector<32x32xf32>
    %cst_22 = arith.constant dense<0.000000e+00> : vector<64x32xf32>
    %25 = tpu.matmul %21, %24, %cst_22 {dimension_numbers = #tpu.dot_dimension_numbers<[1], [0], [0], [1], [0, 0, 1, 1], [], []>} : vector<64x32xf32>, vector<32x32xf32>, vector<64x32xf32> -> vector<64x32xf32>
    %26 = arith.addf %23, %25 : vector<64x32xf32>
    %c88_23 = arith.constant 88 : index
    %c0_24 = arith.constant 0 : index
    %27 = vector.load %arg3[%c88_23, %c0_24] : memref<96x32xf32, #tpu.memory_space<vmem>>, vector<1x32xf32>
    %28 = vector.broadcast %27 : vector<1x32xf32> to vector<64x32xf32>
    %29 = arith.addf %26, %28 : vector<64x32xf32>
    %cst_25 = arith.constant 0.000000e+00 : f32
    %30 = vector.broadcast %cst_25 : f32 to vector<64x32xf32>
    %31 = arith.maximumf %29, %30 : vector<64x32xf32>
    %c0_26 = arith.constant 0 : index
    %c0_27 = arith.constant 0 : index
    %32 = vector.load %arg0[%c0_26, %c0_27] : memref<64x64xf32, #tpu.memory_space<vmem>>, vector<64x64xf32>
    %cst_28 = arith.constant dense<0.000000e+00> : vector<64x32xf32>
    %33 = tpu.matmul %32, %31, %cst_28 {dimension_numbers = #tpu.dot_dimension_numbers<[1], [0], [0], [1], [0, 0, 1, 1], [], []>} : vector<64x64xf32>, vector<64x32xf32>, vector<64x32xf32> -> vector<64x32xf32>
    %c16_29 = arith.constant 16 : index
    %c0_30 = arith.constant 0 : index
    %34 = vector.load %arg3[%c16_29, %c0_30] : memref<96x32xf32, #tpu.memory_space<vmem>>, vector<32x32xf32>
    %cst_31 = arith.constant dense<0.000000e+00> : vector<64x32xf32>
    %35 = tpu.matmul %31, %34, %cst_31 {dimension_numbers = #tpu.dot_dimension_numbers<[1], [0], [0], [1], [0, 0, 1, 1], [], []>} : vector<64x32xf32>, vector<32x32xf32>, vector<64x32xf32> -> vector<64x32xf32>
    %c48_32 = arith.constant 48 : index
    %c0_33 = arith.constant 0 : index
    %36 = vector.load %arg3[%c48_32, %c0_33] : memref<96x32xf32, #tpu.memory_space<vmem>>, vector<32x32xf32>
    %cst_34 = arith.constant dense<0.000000e+00> : vector<64x32xf32>
    %37 = tpu.matmul %33, %36, %cst_34 {dimension_numbers = #tpu.dot_dimension_numbers<[1], [0], [0], [1], [0, 0, 1, 1], [], []>} : vector<64x32xf32>, vector<32x32xf32>, vector<64x32xf32> -> vector<64x32xf32>
    %38 = arith.addf %35, %37 : vector<64x32xf32>
    %c88_35 = arith.constant 88 : index
    %c0_36 = arith.constant 0 : index
    %39 = vector.load %arg3[%c88_35, %c0_36] : memref<96x32xf32, #tpu.memory_space<vmem>>, vector<1x32xf32>
    %40 = vector.broadcast %39 : vector<1x32xf32> to vector<64x32xf32>
    %41 = arith.addf %38, %40 : vector<64x32xf32>
    %cst_37 = arith.constant 0.000000e+00 : f32
    %42 = vector.broadcast %cst_37 : f32 to vector<64x32xf32>
    %43 = arith.maximumf %41, %42 : vector<64x32xf32>
    %c0_38 = arith.constant 0 : index
    %c0_39 = arith.constant 0 : index
    %44 = vector.load %arg2[%c0_38, %c0_39] : memref<32x64xf32, #tpu.memory_space<vmem>>, vector<32x64xf32>
    %cst_40 = arith.constant dense<0.000000e+00> : vector<32x32xf32>
    %45 = tpu.matmul %44, %43, %cst_40 {dimension_numbers = #tpu.dot_dimension_numbers<[1], [0], [0], [1], [0, 0, 1, 1], [], []>} : vector<32x64xf32>, vector<64x32xf32>, vector<32x32xf32> -> vector<32x32xf32>
    %46 = vector.extract_strided_slice %45 {offsets = [0, 0], sizes = [8, 32], strides = [1, 1]} : vector<32x32xf32> to vector<8x32xf32>
    %c0_41 = arith.constant 0 : index
    %c0_42 = arith.constant 0 : index
    %47 = vector.load %arg4[%c0_41, %c0_42] : memref<152x128xf32, #tpu.memory_space<vmem>>, vector<32x128xf32>
    %cst_43 = arith.constant dense<0.000000e+00> : vector<8x128xf32>
    %48 = tpu.matmul %46, %47, %cst_43 {dimension_numbers = #tpu.dot_dimension_numbers<[1], [0], [0], [1], [0, 0, 1, 1], [], []>} : vector<8x32xf32>, vector<32x128xf32>, vector<8x128xf32> -> vector<8x128xf32>
    %49 = vector.extract_strided_slice %45 {offsets = [8, 0], sizes = [8, 32], strides = [1, 1]} : vector<32x32xf32> to vector<8x32xf32>
    %c32 = arith.constant 32 : index
    %c0_44 = arith.constant 0 : index
    %50 = vector.load %arg4[%c32, %c0_44] : memref<152x128xf32, #tpu.memory_space<vmem>>, vector<32x128xf32>
    %cst_45 = arith.constant dense<0.000000e+00> : vector<8x128xf32>
    %51 = tpu.matmul %49, %50, %cst_45 {dimension_numbers = #tpu.dot_dimension_numbers<[1], [0], [0], [1], [0, 0, 1, 1], [], []>} : vector<8x32xf32>, vector<32x128xf32>, vector<8x128xf32> -> vector<8x128xf32>
    %52 = arith.addf %48, %51 : vector<8x128xf32>
    %53 = vector.extract_strided_slice %45 {offsets = [16, 0], sizes = [8, 32], strides = [1, 1]} : vector<32x32xf32> to vector<8x32xf32>
    %c64 = arith.constant 64 : index
    %c0_46 = arith.constant 0 : index
    %54 = vector.load %arg4[%c64, %c0_46] : memref<152x128xf32, #tpu.memory_space<vmem>>, vector<32x128xf32>
    %cst_47 = arith.constant dense<0.000000e+00> : vector<8x128xf32>
    %55 = tpu.matmul %53, %54, %cst_47 {dimension_numbers = #tpu.dot_dimension_numbers<[1], [0], [0], [1], [0, 0, 1, 1], [], []>} : vector<8x32xf32>, vector<32x128xf32>, vector<8x128xf32> -> vector<8x128xf32>
    %56 = arith.addf %52, %55 : vector<8x128xf32>
    %57 = vector.extract_strided_slice %45 {offsets = [24, 0], sizes = [8, 32], strides = [1, 1]} : vector<32x32xf32> to vector<8x32xf32>
    %c96 = arith.constant 96 : index
    %c0_48 = arith.constant 0 : index
    %58 = vector.load %arg4[%c96, %c0_48] : memref<152x128xf32, #tpu.memory_space<vmem>>, vector<32x128xf32>
    %cst_49 = arith.constant dense<0.000000e+00> : vector<8x128xf32>
    %59 = tpu.matmul %57, %58, %cst_49 {dimension_numbers = #tpu.dot_dimension_numbers<[1], [0], [0], [1], [0, 0, 1, 1], [], []>} : vector<8x32xf32>, vector<32x128xf32>, vector<8x128xf32> -> vector<8x128xf32>
    %60 = arith.addf %56, %59 : vector<8x128xf32>
    %c128 = arith.constant 128 : index
    %c0_50 = arith.constant 0 : index
    %61 = vector.load %arg4[%c128, %c0_50] : memref<152x128xf32, #tpu.memory_space<vmem>>, vector<1x128xf32>
    %62 = vector.broadcast %61 : vector<1x128xf32> to vector<8x128xf32>
    %63 = arith.addf %60, %62 : vector<8x128xf32>
    %cst_51 = arith.constant 0.000000e+00 : f32
    %64 = vector.broadcast %cst_51 : f32 to vector<8x128xf32>
    %65 = arith.maximumf %63, %64 : vector<8x128xf32>
    %c136 = arith.constant 136 : index
    %c0_52 = arith.constant 0 : index
    %66 = vector.load %arg4[%c136, %c0_52] : memref<152x128xf32, #tpu.memory_space<vmem>>, vector<1x128xf32>
    %67 = vector.broadcast %66 : vector<1x128xf32> to vector<8x128xf32>
    %68 = arith.mulf %65, %67 : vector<8x128xf32>
    %cst_53 = arith.constant dense<0.000000e+00> : vector<8xf32>
    %69 = vector.multi_reduction <add>, %68, %cst_53 [1] : vector<8x128xf32> to vector<8xf32>
    %70 = vector.shape_cast %69 : vector<8xf32> to vector<8x1xf32>
    %c144 = arith.constant 144 : index
    %c0_54 = arith.constant 0 : index
    %71 = vector.load %arg4[%c144, %c0_54] : memref<152x128xf32, #tpu.memory_space<vmem>>, vector<1x1xf32>
    %72 = vector.broadcast %71 : vector<1x1xf32> to vector<8x1xf32>
    %73 = arith.addf %70, %72 : vector<8x1xf32>
    %74 = vector.extract_strided_slice %73 {offsets = [0, 0], sizes = [2, 1], strides = [1, 1]} : vector<8x1xf32> to vector<2x1xf32>
    %75 = math.absf %74 : vector<2x1xf32>
    %c0_55 = arith.constant 0 : index
    %c0_56 = arith.constant 0 : index
    %76 = vector.load %arg5[%c0_55, %c0_56] : memref<2x1xf32, #tpu.memory_space<vmem>>, vector<2x1xf32>
    tpu.vector_store %arg5[%c0_55, %c0_56], %75 {strides = array<i32>} : memref<2x1xf32, #tpu.memory_space<vmem>>, vector<2x1xf32>,
    return
  }
}

</mosaic_0001>

<llo_original>
// kernel: buchwald_forward.1
$region0: #{buchwald_forward.1}
  #allocation0 [shape = 'u32[]', space=smem, size = 0x4, offset = 0x4, fixed_abs, tag = 'smem constant byte address 0x4 - core index']
  #allocation1 [shape = 'u32[144,128]{1,0:T(1,128)}', space=vmem, size = 0x12000, scoped, tag = 'internal scratch']
  %s0 = inlined_call_operand.vmem [shape: f32[64,64], index: 0, kind: input, shape index: {}]
  %s1 = inlined_call_operand.vmem [shape: f32[64,16], index: 1, kind: input, shape index: {}]
  %s2 = inlined_call_operand.vmem [shape: f32[32,64], index: 2, kind: input, shape index: {}]
  %s3 = inlined_call_operand.vmem [shape: f32[96,32], index: 3, kind: input, shape index: {}]
  %s4 = inlined_call_operand.vmem [shape: f32[152,128], index: 4, kind: input, shape index: {}]
  %s5 = inlined_call_operand.vmem [shape: f32[2,1], index: 5, kind: output, shape index: {}]
  %s6 = sld [smem:[#allocation0]]
  $region30: #{buchwald_forward.1} parent=0
    _
  %s8 = ssub.s32 1, %s6
  %s9 = scalar_select 0, %s8, %s6
  // Predicated region
  $region2: #{buchwald_forward.1} parent=0 // pred_check
    _
  $region3: #{buchwald_forward.1} parent=0 // pred_check_branch
    %11 = sbr.rel (0) target = $region5
  $region4: #{buchwald_forward.1} parent=0 // pred_region
    _
  $region5: #{buchwald_forward.1} parent=0 // pred_fallthru
    _
  // Predicated region
  $region6: #{buchwald_forward.1} parent=0 // pred_check
    _
  $region7: #{buchwald_forward.1} parent=0 // pred_check_branch
    %13 = sbr.rel (0) target = $region9
  $region8: #{buchwald_forward.1} parent=0 // pred_region
    _
  $region9: #{buchwald_forward.1} parent=0 // pred_fallthru
    _
  // Predicated region
  $region10: #{buchwald_forward.1} parent=0 // pred_check
    _
  $region11: #{buchwald_forward.1} parent=0 // pred_check_branch
    %15 = sbr.rel (0) target = $region13
  $region12: #{buchwald_forward.1} parent=0 // pred_region
    _
  $region13: #{buchwald_forward.1} parent=0 // pred_fallthru
    _
  // Predicated region
  $region14: #{buchwald_forward.1} parent=0 // pred_check
    _
  $region15: #{buchwald_forward.1} parent=0 // pred_check_branch
    %17 = sbr.rel (0) target = $region17
  $region16: #{buchwald_forward.1} parent=0 // pred_region
    _
  $region17: #{buchwald_forward.1} parent=0 // pred_fallthru
    _
  // Predicated region
  $region18: #{buchwald_forward.1} parent=0 // pred_check
    _
  $region19: #{buchwald_forward.1} parent=0 // pred_check_branch
    %19 = sbr.rel (0) target = $region21
  $region20: #{buchwald_forward.1} parent=0 // pred_region
    _
  $region21: #{buchwald_forward.1} parent=0 // pred_fallthru
    _
  %v20 = vld [vmem:[%s1] sm:$0xff]
  %v21 = vld [vmem:[%s1 + $0x8] sm:$0xff]
  %v22 = vld [vmem:[%s1 + $0x10] sm:$0xff]
  %v23 = vld [vmem:[%s1 + $0x18] sm:$0xff]
  %v24 = vld [vmem:[%s1 + $0x20] sm:$0xff]
  %v25 = vld [vmem:[%s1 + $0x28] sm:$0xff]
  %v26 = vld [vmem:[%s1 + $0x30] sm:$0xff]
  %v27 = vld [vmem:[%s1 + $0x38] sm:$0xff]
  %v28 = vld [vmem:[%s3] sm:$0xff]
  %v29 = vld [vmem:[%s3 + $0x8] sm:$0xff]
  %v30 = vld [vmem:[%s3 + $0x50] sm:$0x1]
  %v31 = vlaneseq
  %v32 = vshrl.u32 %v31, 7
  %v33 = vsub.s32 0, %v32
  %v34 = vrot.slane %v30, %v33
  %vm35 = vcmask 130048
  %v37 = vsel %vm35, %v20, 0
  %v40 = vsel %vm35, %v21, 0
  %v43 = vsel %vm35, %v22, 0
  %v46 = vsel %vm35, %v23, 0
  %v49 = vsel %vm35, %v24, 0
  %v52 = vsel %vm35, %v25, 0
  %v55 = vsel %vm35, %v26, 0
  %v58 = vsel %vm35, %v27, 0
  %60 = vmatprep.subr.mxu0 0.0
  %61 = vmatpush1.msra.mxu0 %v28
  %62 = vmatprep.subr.mxu0 0.0
  %63 = vmatpush1.msra.mxu0 %v29
  %64 = vmatprep.subr.mxu0 0.0
  %65 = vmatpush1.msra.mxu0 0.0
  %66 = vmatprep.subr.mxu0 0.0
  %67 = vmatpush1.msra.mxu0 0.0
  %68 = vmatprep.subr.mxu0 0.0
  %69 = vmatpush1.msra.mxu0 0.0
  %70 = vmatprep.subr.mxu0 0.0
  %71 = vmatpush1.msra.mxu0 0.0
  %72 = vmatprep.subr.mxu0 0.0
  %73 = vmatpush1.msra.mxu0 0.0
  %74 = vmatprep.subr.mxu0 0.0
  %75 = vmatpush1.msra.mxu0 0.0
  %76 = vmatprep.subr.mxu0 0.0
  %77 = vmatpush1.msra.mxu0 0.0
  %78 = vmatprep.subr.mxu0 0.0
  %79 = vmatpush1.msra.mxu0 0.0
  %80 = vmatprep.subr.mxu0 0.0
  %81 = vmatpush1.msra.mxu0 0.0
  %82 = vmatprep.subr.mxu0 0.0
  %83 = vmatpush1.msra.mxu0 0.0
  %84 = vmatprep.subr.mxu0 0.0
  %85 = vmatpush1.msra.mxu0 0.0
  %86 = vmatprep.subr.mxu0 0.0
  %87 = vmatpush1.msra.mxu0 0.0
  %88 = vmatprep.subr.mxu0 0.0
  %89 = vmatpush1.msra.mxu0 0.0
  %90 = vmatprep.subr.mxu0 0.0
  %91 = vmatpush1.msra.mxu0 0.0
  %92 = vmatprep.subr.mxu0 0.0
  %93 = vmatpush1.msra.mxu0 0.0
  %94 = vmatprep.subr.mxu0 0.0
  %95 = vmatpush1.msra.mxu0 0.0
  %96 = vmatprep.subr.mxu0 0.0
  %97 = vmatpush1.msra.mxu0 0.0
  %98 = vmatprep.subr.mxu0 0.0
  %99 = vmatpush1.msra.mxu0 0.0
  %100 = vmatprep.subr.mxu0 0.0
  %101 = vmatpush1.msra.mxu0 0.0
  %102 = vmatprep.subr.mxu0 0.0
  %103 = vmatpush1.msra.mxu0 0.0
  %104 = vmatprep.subr.mxu0 0.0
  %105 = vmatpush1.msra.mxu0 0.0
  %106 = vmatprep.subr.mxu0 0.0
  %107 = vmatpush1.msra.mxu0 0.0
  %108 = vmatprep.subr.mxu0 0.0
  %109 = vmatpush1.msra.mxu0 0.0
  %110 = vmatprep.subr.mxu0 0.0
  %111 = vmatpush1.msra.mxu0 0.0
  %112 = vmatprep.subr.mxu0 0.0
  %113 = vmatpush1.msra.mxu0 0.0
  %114 = vmatprep.subr.mxu0 0.0
  %115 = vmatpush1.msra.mxu0 0.0
  %116 = vmatprep.subr.mxu0 0.0
  %117 = vmatpush1.msra.mxu0 0.0
  %118 = vmatprep.subr.mxu0 0.0
  %119 = vmatpush1.msra.mxu0 0.0
  %120 = vmatprep.subr.mxu0 0.0
  %121 = vmatpush1.msra.mxu0 0.0
  %122 = vmatprep.subr.mxu0 0.0
  %123 = vmatpush1.msra.mxu0 0.0
  %124 = vmatprep.mubr.f32.mxu0 0.0
  %125 = vmatmul.mubr.f32.gmra.mrb[0].mxu0 %v37
  %v126 = vpop.f32.mrb[0].mxu0
  %v127 = vadd.f32 %v34, %v126
  %v128 = vpop.f32.mrb[0].mxu0
  %129 = vmatprep.mubr.f32.mxu0 0.0
  %130 = vmatmul.mubr.f32.gmra.mrb[0].mxu0 %v40
  %v131 = vpop.f32.mrb[0].mxu0
  %v132 = vadd.f32 %v34, %v131
  %v133 = vpop.f32.mrb[0].mxu0
  %134 = vmatprep.mubr.f32.mxu0 0.0
  %135 = vmatmul.mubr.f32.gmra.mrb[0].mxu0 %v43
  %v136 = vpop.f32.mrb[0].mxu0
  %v137 = vadd.f32 %v34, %v136
  %v138 = vpop.f32.mrb[0].mxu0
  %139 = vmatprep.mubr.f32.mxu0 0.0
  %140 = vmatmul.mubr.f32.gmra.mrb[0].mxu0 %v46
  %v141 = vpop.f32.mrb[0].mxu0
  %v142 = vadd.f32 %v34, %v141
  %v143 = vpop.f32.mrb[0].mxu0
  %144 = vmatprep.mubr.f32.mxu0 0.0
  %145 = vmatmul.mubr.f32.gmra.mrb[0].mxu0 %v49
  %v146 = vpop.f32.mrb[0].mxu0
  %v147 = vadd.f32 %v34, %v146
  %v148 = vpop.f32.mrb[0].mxu0
  %149 = vmatprep.mubr.f32.mxu0 0.0
  %150 = vmatmul.mubr.f32.gmra.mrb[0].mxu0 %v52
  %v151 = vpop.f32.mrb[0].mxu0
  %v152 = vadd.f32 %v34, %v151
  %v153 = vpop.f32.mrb[0].mxu0
  %154 = vmatprep.mubr.f32.mxu0 0.0
  %155 = vmatmul.mubr.f32.gmra.mrb[0].mxu0 %v55
  %v156 = vpop.f32.mrb[0].mxu0
  %v157 = vadd.f32 %v34, %v156
  %v158 = vpop.f32.mrb[0].mxu0
  %159 = vmatprep.mubr.f32.mxu0 0.0
  %160 = vmatmul.mubr.f32.gmra.mrb[0].mxu0 %v58
  %v161 = vpop.f32.mrb[0].mxu0
  %v162 = vadd.f32 %v34, %v161
  %v163 = vpop.f32.mrb[0].mxu0
  %164 = vdwg.mxu0
  %v165 = vmax.f32 %v127, 0.0
  %v166 = vmax.f32 %v132, 0.0
  %v167 = vmax.f32 %v137, 0.0
  %v168 = vmax.f32 %v142, 0.0
  %v169 = vmax.f32 %v147, 0.0
  %v170 = vmax.f32 %v152, 0.0
  %v171 = vmax.f32 %v157, 0.0
  %v172 = vmax.f32 %v162, 0.0
  %v173 = vld [vmem:[%s0] sm:$0xff]
  %v174 = vld [vmem:[%s0 + $0x8] sm:$0xff]
  %v175 = vld [vmem:[%s0 + $0x10] sm:$0xff]
  %v176 = vld [vmem:[%s0 + $0x18] sm:$0xff]
  %v177 = vld [vmem:[%s0 + $0x20] sm:$0xff]
  %v178 = vld [vmem:[%s0 + $0x28] sm:$0xff]
  %v179 = vld [vmem:[%s0 + $0x30] sm:$0xff]
  %v180 = vld [vmem:[%s0 + $0x38] sm:$0xff]
  %vm181 = vcmask 523264
  %v183 = vsel %vm181, %v173, 0
  %v186 = vsel %vm181, %v174, 0
  %v189 = vsel %vm181, %v175, 0
  %v192 = vsel %vm181, %v176, 0
  %v195 = vsel %vm181, %v177, 0
  %v198 = vsel %vm181, %v178, 0
  %v201 = vsel %vm181, %v179, 0
  %v204 = vsel %vm181, %v180, 0
  %206 = vmatprep.subr.mxu0 0.0
  %207 = vmatpush1.msra.mxu0 %v165
  %208 = vmatprep.subr.mxu0 0.0
  %209 = vmatpush1.msra.mxu0 %v166
  %210 = vmatprep.subr.mxu0 0.0
  %211 = vmatpush1.msra.mxu0 %v167
  %212 = vmatprep.subr.mxu0 0.0
  %213 = vmatpush1.msra.mxu0 %v168
  %214 = vmatprep.subr.mxu0 0.0
  %215 = vmatpush1.msra.mxu0 %v169
  %216 = vmatprep.subr.mxu0 0.0
  %217 = vmatpush1.msra.mxu0 %v170
  %218 = vmatprep.subr.mxu0 0.0
  %219 = vmatpush1.msra.mxu0 %v171
  %220 = vmatprep.subr.mxu0 0.0
  %221 = vmatpush1.msra.mxu0 %v172
  %222 = vmatprep.subr.mxu0 0.0
  %223 = vmatpush1.msra.mxu0 0.0
  %224 = vmatprep.subr.mxu0 0.0
  %225 = vmatpush1.msra.mxu0 0.0
  %226 = vmatprep.subr.mxu0 0.0
  %227 = vmatpush1.msra.mxu0 0.0
  %228 = vmatprep.subr.mxu0 0.0
  %229 = vmatpush1.msra.mxu0 0.0
  %230 = vmatprep.subr.mxu0 0.0
  %231 = vmatpush1.msra.mxu0 0.0
  %232 = vmatprep.subr.mxu0 0.0
  %233 = vmatpush1.msra.mxu0 0.0
  %234 = vmatprep.subr.mxu0 0.0
  %235 = vmatpush1.msra.mxu0 0.0
  %236 = vmatprep.subr.mxu0 0.0
  %237 = vmatpush1.msra.mxu0 0.0
  %238 = vmatprep.subr.mxu0 0.0
  %239 = vmatpush1.msra.mxu0 0.0
  %240 = vmatprep.subr.mxu0 0.0
  %241 = vmatpush1.msra.mxu0 0.0
  %242 = vmatprep.subr.mxu0 0.0
  %243 = vmatpush1.msra.mxu0 0.0
  %244 = vmatprep.subr.mxu0 0.0
  %245 = vmatpush1.msra.mxu0 0.0
  %246 = vmatprep.subr.mxu0 0.0
  %247 = vmatpush1.msra.mxu0 0.0
  %248 = vmatprep.subr.mxu0 0.0
  %249 = vmatpush1.msra.mxu0 0.0
  %250 = vmatprep.subr.mxu0 0.0
  %251 = vmatpush1.msra.mxu0 0.0
  %252 = vmatprep.subr.mxu0 0.0
  %253 = vmatpush1.msra.mxu0 0.0
  %254 = vmatprep.subr.mxu0 0.0
  %255 = vmatpush1.msra.mxu0 0.0
  %256 = vmatprep.subr.mxu0 0.0
  %257 = vmatpush1.msra.mxu0 0.0
  %258 = vmatprep.subr.mxu0 0.0
  %259 = vmatpush1.msra.mxu0 0.0
  %260 = vmatprep.subr.mxu0 0.0
  %261 = vmatpush1.msra.mxu0 0.0
  %262 = vmatprep.subr.mxu0 0.0
  %263 = vmatpush1.msra.mxu0 0.0
  %264 = vmatprep.subr.mxu0 0.0
  %265 = vmatpush1.msra.mxu0 0.0
  %266 = vmatprep.subr.mxu0 0.0
  %267 = vmatpush1.msra.mxu0 0.0
  %268 = vmatprep.subr.mxu0 0.0
  %269 = vmatpush1.msra.mxu0 0.0
  %270 = vmatprep.mubr.f32.mxu0 0.0
  %271 = vmatmul.mubr.f32.gmra.mrb[0].mxu0 %v183
  %v272 = vpop.f32.mrb[0].mxu0
  %v273 = vadd.f32 0.0, %v272
  %v274 = vpop.f32.mrb[0].mxu0
  %275 = vmatprep.mubr.f32.mxu0 0.0
  %276 = vmatmul.mubr.f32.gmra.mrb[0].mxu0 %v186
  %v277 = vpop.f32.mrb[0].mxu0
  %v278 = vadd.f32 0.0, %v277
  %v279 = vpop.f32.mrb[0].mxu0
  %280 = vmatprep.mubr.f32.mxu0 0.0
  %281 = vmatmul.mubr.f32.gmra.mrb[0].mxu0 %v189
  %v282 = vpop.f32.mrb[0].mxu0
  %v283 = vadd.f32 0.0, %v282
  %v284 = vpop.f32.mrb[0].mxu0
  %285 = vmatprep.mubr.f32.mxu0 0.0
  %286 = vmatmul.mubr.f32.gmra.mrb[0].mxu0 %v192
  %v287 = vpop.f32.mrb[0].mxu0
  %v288 = vadd.f32 0.0, %v287
  %v289 = vpop.f32.mrb[0].mxu0
  %290 = vmatprep.mubr.f32.mxu0 0.0
  %291 = vmatmul.mubr.f32.gmra.mrb[0].mxu0 %v195
  %v292 = vpop.f32.mrb[0].mxu0
  %v293 = vadd.f32 0.0, %v292
  %v294 = vpop.f32.mrb[0].mxu0
  %295 = vmatprep.mubr.f32.mxu0 0.0
  %296 = vmatmul.mubr.f32.gmra.mrb[0].mxu0 %v198
  %v297 = vpop.f32.mrb[0].mxu0
  %v298 = vadd.f32 0.0, %v297
  %v299 = vpop.f32.mrb[0].mxu0
  %300 = vmatprep.mubr.f32.mxu0 0.0
  %301 = vmatmul.mubr.f32.gmra.mrb[0].mxu0 %v201
  %v302 = vpop.f32.mrb[0].mxu0
  %v303 = vadd.f32 0.0, %v302
  %v304 = vpop.f32.mrb[0].mxu0
  %305 = vmatprep.mubr.f32.mxu0 0.0
  %306 = vmatmul.mubr.f32.gmra.mrb[0].mxu0 %v204
  %v307 = vpop.f32.mrb[0].mxu0
  %v308 = vadd.f32 0.0, %v307
  %v309 = vpop.f32.mrb[0].mxu0
  %310 = vdwg.mxu0
  %v311 = vld [vmem:[%s3 + $0x10] sm:$0xff]
  %v312 = vld [vmem:[%s3 + $0x18] sm:$0xff]
  %v313 = vld [vmem:[%s3 + $0x20] sm:$0xff]
  %v314 = vld [vmem:[%s3 + $0x28] sm:$0xff]
  %v315 = vld [vmem:[%s3 + $0x30] sm:$0xff]
  %v316 = vld [vmem:[%s3 + $0x38] sm:$0xff]
  %v317 = vld [vmem:[%s3 + $0x40] sm:$0xff]
  %v318 = vld [vmem:[%s3 + $0x48] sm:$0xff]
  %vm319 = vcmask 261120
  %v321 = vsel %vm319, %v273, 0
  %v324 = vsel %vm319, %v278, 0
  %v327 = vsel %vm319, %v283, 0
  %v330 = vsel %vm319, %v288, 0
  %v333 = vsel %vm319, %v293, 0
  %v336 = vsel %vm319, %v298, 0
  %v339 = vsel %vm319, %v303, 0
  %v342 = vsel %vm319, %v308, 0
  %344 = vmatprep.subr.mxu0 0.0
  %345 = vmatpush1.msra.mxu0 %v315
  %346 = vmatprep.subr.mxu0 0.0
  %347 = vmatpush1.msra.mxu0 %v316
  %348 = vmatprep.subr.mxu0 0.0
  %349 = vmatpush1.msra.mxu0 %v317
  %350 = vmatprep.subr.mxu0 0.0
  %351 = vmatpush1.msra.mxu0 %v318
  %352 = vmatprep.subr.mxu0 0.0
  %353 = vmatpush1.msra.mxu0 0.0
  %354 = vmatprep.subr.mxu0 0.0
  %355 = vmatpush1.msra.mxu0 0.0
  %356 = vmatprep.subr.mxu0 0.0
  %357 = vmatpush1.msra.mxu0 0.0
  %358 = vmatprep.subr.mxu0 0.0
  %359 = vmatpush1.msra.mxu0 0.0
  %360 = vmatprep.subr.mxu0 0.0
  %361 = vmatpush1.msra.mxu0 0.0
  %362 = vmatprep.subr.mxu0 0.0
  %363 = vmatpush1.msra.mxu0 0.0
  %364 = vmatprep.subr.mxu0 0.0
  %365 = vmatpush1.msra.mxu0 0.0
  %366 = vmatprep.subr.mxu0 0.0
  %367 = vmatpush1.msra.mxu0 0.0
  %368 = vmatprep.subr.mxu0 0.0
  %369 = vmatpush1.msra.mxu0 0.0
  %370 = vmatprep.subr.mxu0 0.0
  %371 = vmatpush1.msra.mxu0 0.0
  %372 = vmatprep.subr.mxu0 0.0
  %373 = vmatpush1.msra.mxu0 0.0
  %374 = vmatprep.subr.mxu0 0.0
  %375 = vmatpush1.msra.mxu0 0.0
  %376 = vmatprep.subr.mxu0 0.0
  %377 = vmatpush1.msra.mxu0 0.0
  %378 = vmatprep.subr.mxu0 0.0
  %379 = vmatpush1.msra.mxu0 0.0
  %380 = vmatprep.subr.mxu0 0.0
  %381 = vmatpush1.msra.mxu0 0.0
  %382 = vmatprep.subr.mxu0 0.0
  %383 = vmatpush1.msra.mxu0 0.0
  %384 = vmatprep.subr.mxu0 0.0
  %385 = vmatpush1.msra.mxu0 0.0
  %386 = vmatprep.subr.mxu0 0.0
  %387 = vmatpush1.msra.mxu0 0.0
  %388 = vmatprep.subr.mxu0 0.0
  %389 = vmatpush1.msra.mxu0 0.0
  %390 = vmatprep.subr.mxu0 0.0
  %391 = vmatpush1.msra.mxu0 0.0
  %392 = vmatprep.subr.mxu0 0.0
  %393 = vmatpush1.msra.mxu0 0.0
  %394 = vmatprep.subr.mxu0 0.0
  %395 = vmatpush1.msra.mxu0 0.0
  %396 = vmatprep.subr.mxu0 0.0
  %397 = vmatpush1.msra.mxu0 0.0
  %398 = vmatprep.subr.mxu0 0.0
  %399 = vmatpush1.msra.mxu0 0.0
  %400 = vmatprep.subr.mxu0 0.0
  %401 = vmatpush1.msra.mxu0 0.0
  %402 = vmatprep.subr.mxu0 0.0
  %403 = vmatpush1.msra.mxu0 0.0
  %404 = vmatprep.subr.mxu0 0.0
  %405 = vmatpush1.msra.mxu0 0.0
  %406 = vmatprep.subr.mxu0 0.0
  %407 = vmatpush1.msra.mxu0 0.0
  %408 = vmatprep.mubr.f32.mxu0 0.0
  %409 = vmatmul.mubr.f32.gmra.mrb[0].mxu0 %v321
  %v410 = vpop.f32.mrb[0].mxu0
  %v411 = vadd.f32 0.0, %v410
  %v412 = vpop.f32.mrb[0].mxu0
  %413 = vmatprep.mubr.f32.mxu0 0.0
  %414 = vmatmul.mubr.f32.gmra.mrb[0].mxu0 %v324
  %v415 = vpop.f32.mrb[0].mxu0
  %v416 = vadd.f32 0.0, %v415
  %v417 = vpop.f32.mrb[0].mxu0
  %418 = vmatprep.mubr.f32.mxu0 0.0
  %419 = vmatmul.mubr.f32.gmra.mrb[0].mxu0 %v327
  %v420 = vpop.f32.mrb[0].mxu0
  %v421 = vadd.f32 0.0, %v420
  %v422 = vpop.f32.mrb[0].mxu0
  %423 = vmatprep.mubr.f32.mxu0 0.0
  %424 = vmatmul.mubr.f32.gmra.mrb[0].mxu0 %v330
  %v425 = vpop.f32.mrb[0].mxu0
  %v426 = vadd.f32 0.0, %v425
  %v427 = vpop.f32.mrb[0].mxu0
  %428 = vmatprep.mubr.f32.mxu0 0.0
  %429 = vmatmul.mubr.f32.gmra.mrb[0].mxu0 %v333
  %v430 = vpop.f32.mrb[0].mxu0
  %v431 = vadd.f32 0.0, %v430
  %v432 = vpop.f32.mrb[0].mxu0
  %433 = vmatprep.mubr.f32.mxu0 0.0
  %434 = vmatmul.mubr.f32.gmra.mrb[0].mxu0 %v336
  %v435 = vpop.f32.mrb[0].mxu0
  %v436 = vadd.f32 0.0, %v435
  %v437 = vpop.f32.mrb[0].mxu0
  %438 = vmatprep.mubr.f32.mxu0 0.0
  %439 = vmatmul.mubr.f32.gmra.mrb[0].mxu0 %v339
  %v440 = vpop.f32.mrb[0].mxu0
  %v441 = vadd.f32 0.0, %v440
  %v442 = vpop.f32.mrb[0].mxu0
  %443 = vmatprep.mubr.f32.mxu0 0.0
  %444 = vmatmul.mubr.f32.gmra.mrb[0].mxu0 %v342
  %v445 = vpop.f32.mrb[0].mxu0
  %v446 = vadd.f32 0.0, %v445
  %v447 = vpop.f32.mrb[0].mxu0
  %448 = vdwg.mxu0
  %v450 = vsel %vm319, %v165, 0
  %v453 = vsel %vm319, %v166, 0
  %v456 = vsel %vm319, %v167, 0
  %v459 = vsel %vm319, %v168, 0
  %v462 = vsel %vm319, %v169, 0
  %v465 = vsel %vm319, %v170, 0
  %v468 = vsel %vm319, %v171, 0
  %v471 = vsel %vm319, %v172, 0
  %473 = vmatprep.subr.mxu0 0.0
  %474 = vmatpush1.msra.mxu0 %v311
  %475 = vmatprep.subr.mxu0 0.0
  %476 = vmatpush1.msra.mxu0 %v312
  %477 = vmatprep.subr.mxu0 0.0
  %478 = vmatpush1.msra.mxu0 %v313
  %479 = vmatprep.subr.mxu0 0.0
  %480 = vmatpush1.msra.mxu0 %v314
  %481 = vmatprep.subr.mxu0 0.0
  %482 = vmatpush1.msra.mxu0 0.0
  %483 = vmatprep.subr.mxu0 0.0
  %484 = vmatpush1.msra.mxu0 0.0
  %485 = vmatprep.subr.mxu0 0.0
  %486 = vmatpush1.msra.mxu0 0.0
  %487 = vmatprep.subr.mxu0 0.0
  %488 = vmatpush1.msra.mxu0 0.0
  %489 = vmatprep.subr.mxu0 0.0
  %490 = vmatpush1.msra.mxu0 0.0
  %491 = vmatprep.subr.mxu0 0.0
  %492 = vmatpush1.msra.mxu0 0.0
  %493 = vmatprep.subr.mxu0 0.0
  %494 = vmatpush1.msra.mxu0 0.0
  %495 = vmatprep.subr.mxu0 0.0
  %496 = vmatpush1.msra.mxu0 0.0
  %497 = vmatprep.subr.mxu0 0.0
  %498 = vmatpush1.msra.mxu0 0.0
  %499 = vmatprep.subr.mxu0 0.0
  %500 = vmatpush1.msra.mxu0 0.0
  %501 = vmatprep.subr.mxu0 0.0
  %502 = vmatpush1.msra.mxu0 0.0
  %503 = vmatprep.subr.mxu0 0.0
  %504 = vmatpush1.msra.mxu0 0.0
  %505 = vmatprep.subr.mxu0 0.0
  %506 = vmatpush1.msra.mxu0 0.0
  %507 = vmatprep.subr.mxu0 0.0
  %508 = vmatpush1.msra.mxu0 0.0
  %509 = vmatprep.subr.mxu0 0.0
  %510 = vmatpush1.msra.mxu0 0.0
  %511 = vmatprep.subr.mxu0 0.0
  %512 = vmatpush1.msra.mxu0 0.0
  %513 = vmatprep.subr.mxu0 0.0
  %514 = vmatpush1.msra.mxu0 0.0
  %515 = vmatprep.subr.mxu0 0.0
  %516 = vmatpush1.msra.mxu0 0.0
  %517 = vmatprep.subr.mxu0 0.0
  %518 = vmatpush1.msra.mxu0 0.0
  %519 = vmatprep.subr.mxu0 0.0
  %520 = vmatpush1.msra.mxu0 0.0
  %521 = vmatprep.subr.mxu0 0.0
  %522 = vmatpush1.msra.mxu0 0.0
  %523 = vmatprep.subr.mxu0 0.0
  %524 = vmatpush1.msra.mxu0 0.0
  %525 = vmatprep.subr.mxu0 0.0
  %526 = vmatpush1.msra.mxu0 0.0
  %527 = vmatprep.subr.mxu0 0.0
  %528 = vmatpush1.msra.mxu0 0.0
  %529 = vmatprep.subr.mxu0 0.0
  %530 = vmatpush1.msra.mxu0 0.0
  %531 = vmatprep.subr.mxu0 0.0
  %532 = vmatpush1.msra.mxu0 0.0
  %533 = vmatprep.subr.mxu0 0.0
  %534 = vmatpush1.msra.mxu0 0.0
  %535 = vmatprep.subr.mxu0 0.0
  %536 = vmatpush1.msra.mxu0 0.0
  %537 = vmatprep.mubr.f32.mxu0 0.0
  %538 = vmatmul.mubr.f32.gmra.mrb[0].mxu0 %v450
  %v539 = vpop.f32.mrb[0].mxu0
  %v540 = vadd.f32 %v411, %v539
  %v541 = vpop.f32.mrb[0].mxu0
  %542 = vmatprep.mubr.f32.mxu0 0.0
  %543 = vmatmul.mubr.f32.gmra.mrb[0].mxu0 %v453
  %v544 = vpop.f32.mrb[0].mxu0
  %v545 = vadd.f32 %v416, %v544
  %v546 = vpop.f32.mrb[0].mxu0
  %547 = vmatprep.mubr.f32.mxu0 0.0
  %548 = vmatmul.mubr.f32.gmra.mrb[0].mxu0 %v456
  %v549 = vpop.f32.mrb[0].mxu0
  %v550 = vadd.f32 %v421, %v549
  %v551 = vpop.f32.mrb[0].mxu0
  %552 = vmatprep.mubr.f32.mxu0 0.0
  %553 = vmatmul.mubr.f32.gmra.mrb[0].mxu0 %v459
  %v554 = vpop.f32.mrb[0].mxu0
  %v555 = vadd.f32 %v426, %v554
  %v556 = vpop.f32.mrb[0].mxu0
  %557 = vmatprep.mubr.f32.mxu0 0.0
  %558 = vmatmul.mubr.f32.gmra.mrb[0].mxu0 %v462
  %v559 = vpop.f32.mrb[0].mxu0
  %v560 = vadd.f32 %v431, %v559
  %v561 = vpop.f32.mrb[0].mxu0
  %562 = vmatprep.mubr.f32.mxu0 0.0
  %563 = vmatmul.mubr.f32.gmra.mrb[0].mxu0 %v465
  %v564 = vpop.f32.mrb[0].mxu0
  %v565 = vadd.f32 %v436, %v564
  %v566 = vpop.f32.mrb[0].mxu0
  %567 = vmatprep.mubr.f32.mxu0 0.0
  %568 = vmatmul.mubr.f32.gmra.mrb[0].mxu0 %v468
  %v569 = vpop.f32.mrb[0].mxu0
  %v570 = vadd.f32 %v441, %v569
  %v571 = vpop.f32.mrb[0].mxu0
  %572 = vmatprep.mubr.f32.mxu0 0.0
  %573 = vmatmul.mubr.f32.gmra.mrb[0].mxu0 %v471
  %v574 = vpop.f32.mrb[0].mxu0
  %v575 = vadd.f32 %v446, %v574
  %v576 = vpop.f32.mrb[0].mxu0
  %577 = vdwg.mxu0
  %v578 = vld [vmem:[%s3 + $0x58] sm:$0x1]
  %v579 = vlaneseq
  %v580 = vshrl.u32 %v579, 7
  %v581 = vsub.s32 0, %v580
  %v582 = vrot.slane %v578, %v581
  %v583 = vadd.f32 %v540, %v582
  %v584 = vadd.f32 %v545, %v582
  %v585 = vadd.f32 %v550, %v582
  %v586 = vadd.f32 %v555, %v582
  %v587 = vadd.f32 %v560, %v582
  %v588 = vadd.f32 %v565, %v582
  %v589 = vadd.f32 %v570, %v582
  %v590 = vadd.f32 %v575, %v582
  %v591 = vmax.f32 %v583, 0.0
  %v592 = vmax.f32 %v584, 0.0
  %v593 = vmax.f32 %v585, 0.0
  %v594 = vmax.f32 %v586, 0.0
  %v595 = vmax.f32 %v587, 0.0
  %v596 = vmax.f32 %v588, 0.0
  %v597 = vmax.f32 %v589, 0.0
  %v598 = vmax.f32 %v590, 0.0
  %599 = vmatprep.subr.mxu0 0.0
  %600 = vmatpush1.msra.mxu0 %v591
  %601 = vmatprep.subr.mxu0 0.0
  %602 = vmatpush1.msra.mxu0 %v592
  %603 = vmatprep.subr.mxu0 0.0
  %604 = vmatpush1.msra.mxu0 %v593
  %605 = vmatprep.subr.mxu0 0.0
  %606 = vmatpush1.msra.mxu0 %v594
  %607 = vmatprep.subr.mxu0 0.0
  %608 = vmatpush1.msra.mxu0 %v595
  %609 = vmatprep.subr.mxu0 0.0
  %610 = vmatpush1.msra.mxu0 %v596
  %611 = vmatprep.subr.mxu0 0.0
  %612 = vmatpush1.msra.mxu0 %v597
  %613 = vmatprep.subr.mxu0 0.0
  %614 = vmatpush1.msra.mxu0 %v598
  %615 = vmatprep.subr.mxu0 0.0
  %616 = vmatpush1.msra.mxu0 0.0
  %617 = vmatprep.subr.mxu0 0.0
  %618 = vmatpush1.msra.mxu0 0.0
  %619 = vmatprep.subr.mxu0 0.0
  %620 = vmatpush1.msra.mxu0 0.0
  %621 = vmatprep.subr.mxu0 0.0
  %622 = vmatpush1.msra.mxu0 0.0
  %623 = vmatprep.subr.mxu0 0.0
  %624 = vmatpush1.msra.mxu0 0.0
  %625 = vmatprep.subr.mxu0 0.0
  %626 = vmatpush1.msra.mxu0 0.0
  %627 = vmatprep.subr.mxu0 0.0
  %628 = vmatpush1.msra.mxu0 0.0
  %629 = vmatprep.subr.mxu0 0.0
  %630 = vmatpush1.msra.mxu0 0.0
  %631 = vmatprep.subr.mxu0 0.0
  %632 = vmatpush1.msra.mxu0 0.0
  %633 = vmatprep.subr.mxu0 0.0
  %634 = vmatpush1.msra.mxu0 0.0
  %635 = vmatprep.subr.mxu0 0.0
  %636 = vmatpush1.msra.mxu0 0.0
  %637 = vmatprep.subr.mxu0 0.0
  %638 = vmatpush1.msra.mxu0 0.0
  %639 = vmatprep.subr.mxu0 0.0
  %640 = vmatpush1.msra.mxu0 0.0
  %641 = vmatprep.subr.mxu0 0.0
  %642 = vmatpush1.msra.mxu0 0.0
  %643 = vmatprep.subr.mxu0 0.0
  %644 = vmatpush1.msra.mxu0 0.0
  %645 = vmatprep.subr.mxu0 0.0
  %646 = vmatpush1.msra.mxu0 0.0
  %647 = vmatprep.subr.mxu0 0.0
  %648 = vmatpush1.msra.mxu0 0.0
  %649 = vmatprep.subr.mxu0 0.0
  %650 = vmatpush1.msra.mxu0 0.0
  %651 = vmatprep.subr.mxu0 0.0
  %652 = vmatpush1.msra.mxu0 0.0
  %653 = vmatprep.subr.mxu0 0.0
  %654 = vmatpush1.msra.mxu0 0.0
  %655 = vmatprep.subr.mxu0 0.0
  %656 = vmatpush1.msra.mxu0 0.0
  %657 = vmatprep.subr.mxu0 0.0
  %658 = vmatpush1.msra.mxu0 0.0
  %659 = vmatprep.subr.mxu0 0.0
  %660 = vmatpush1.msra.mxu0 0.0
  %661 = vmatprep.subr.mxu0 0.0
  %662 = vmatpush1.msra.mxu0 0.0
  %663 = vmatprep.mubr.f32.mxu0 0.0
  %664 = vmatmul.mubr.f32.gmra.mrb[0].mxu0 %v183
  %v665 = vpop.f32.mrb[0].mxu0
  %v666 = vadd.f32 0.0, %v665
  %v667 = vpop.f32.mrb[0].mxu0
  %668 = vmatprep.mubr.f32.mxu0 0.0
  %669 = vmatmul.mubr.f32.gmra.mrb[0].mxu0 %v186
  %v670 = vpop.f32.mrb[0].mxu0
  %v671 = vadd.f32 0.0, %v670
  %v672 = vpop.f32.mrb[0].mxu0
  %673 = vmatprep.mubr.f32.mxu0 0.0
  %674 = vmatmul.mubr.f32.gmra.mrb[0].mxu0 %v189
  %v675 = vpop.f32.mrb[0].mxu0
  %v676 = vadd.f32 0.0, %v675
  %v677 = vpop.f32.mrb[0].mxu0
  %678 = vmatprep.mubr.f32.mxu0 0.0
  %679 = vmatmul.mubr.f32.gmra.mrb[0].mxu0 %v192
  %v680 = vpop.f32.mrb[0].mxu0
  %v681 = vadd.f32 0.0, %v680
  %v682 = vpop.f32.mrb[0].mxu0
  %683 = vmatprep.mubr.f32.mxu0 0.0
  %684 = vmatmul.mubr.f32.gmra.mrb[0].mxu0 %v195
  %v685 = vpop.f32.mrb[0].mxu0
  %v686 = vadd.f32 0.0, %v685
  %v687 = vpop.f32.mrb[0].mxu0
  %688 = vmatprep.mubr.f32.mxu0 0.0
  %689 = vmatmul.mubr.f32.gmra.mrb[0].mxu0 %v198
  %v690 = vpop.f32.mrb[0].mxu0
  %v691 = vadd.f32 0.0, %v690
  %v692 = vpop.f32.mrb[0].mxu0
  %693 = vmatprep.mubr.f32.mxu0 0.0
  %694 = vmatmul.mubr.f32.gmra.mrb[0].mxu0 %v201
  %v695 = vpop.f32.mrb[0].mxu0
  %v696 = vadd.f32 0.0, %v695
  %v697 = vpop.f32.mrb[0].mxu0
  %698 = vmatprep.mubr.f32.mxu0 0.0
  %699 = vmatmul.mubr.f32.gmra.mrb[0].mxu0 %v204
  %v700 = vpop.f32.mrb[0].mxu0
  %v701 = vadd.f32 0.0, %v700
  %v702 = vpop.f32.mrb[0].mxu0
  %703 = vdwg.mxu0
  %v705 = vsel %vm319, %v666, 0
  %v708 = vsel %vm319, %v671, 0
  %v711 = vsel %vm319, %v676, 0
  %v714 = vsel %vm319, %v681, 0
  %v717 = vsel %vm319, %v686, 0
  %v720 = vsel %vm319, %v691, 0
  %v723 = vsel %vm319, %v696, 0
  %v726 = vsel %vm319, %v701, 0
  %728 = vmatprep.subr.mxu0 0.0
  %729 = vmatpush1.msra.mxu0 %v315
  %730 = vmatprep.subr.mxu0 0.0
  %731 = vmatpush1.msra.mxu0 %v316
  %732 = vmatprep.subr.mxu0 0.0
  %733 = vmatpush1.msra.mxu0 %v317
  %734 = vmatprep.subr.mxu0 0.0
  %735 = vmatpush1.msra.mxu0 %v318
  %736 = vmatprep.subr.mxu0 0.0
  %737 = vmatpush1.msra.mxu0 0.0
  %738 = vmatprep.subr.mxu0 0.0
  %739 = vmatpush1.msra.mxu0 0.0
  %740 = vmatprep.subr.mxu0 0.0
  %741 = vmatpush1.msra.mxu0 0.0
  %742 = vmatprep.subr.mxu0 0.0
  %743 = vmatpush1.msra.mxu0 0.0
  %744 = vmatprep.subr.mxu0 0.0
  %745 = vmatpush1.msra.mxu0 0.0
  %746 = vmatprep.subr.mxu0 0.0
  %747 = vmatpush1.msra.mxu0 0.0
  %748 = vmatprep.subr.mxu0 0.0
  %749 = vmatpush1.msra.mxu0 0.0
  %750 = vmatprep.subr.mxu0 0.0
  %751 = vmatpush1.msra.mxu0 0.0
  %752 = vmatprep.subr.mxu0 0.0
  %753 = vmatpush1.msra.mxu0 0.0
  %754 = vmatprep.subr.mxu0 0.0
  %755 = vmatpush1.msra.mxu0 0.0
  %756 = vmatprep.subr.mxu0 0.0
  %757 = vmatpush1.msra.mxu0 0.0
  %758 = vmatprep.subr.mxu0 0.0
  %759 = vmatpush1.msra.mxu0 0.0
  %760 = vmatprep.subr.mxu0 0.0
  %761 = vmatpush1.msra.mxu0 0.0
  %762 = vmatprep.subr.mxu0 0.0
  %763 = vmatpush1.msra.mxu0 0.0
  %764 = vmatprep.subr.mxu0 0.0
  %765 = vmatpush1.msra.mxu0 0.0
  %766 = vmatprep.subr.mxu0 0.0
  %767 = vmatpush1.msra.mxu0 0.0
  %768 = vmatprep.subr.mxu0 0.0
  %769 = vmatpush1.msra.mxu0 0.0
  %770 = vmatprep.subr.mxu0 0.0
  %771 = vmatpush1.msra.mxu0 0.0
  %772 = vmatprep.subr.mxu0 0.0
  %773 = vmatpush1.msra.mxu0 0.0
  %774 = vmatprep.subr.mxu0 0.0
  %775 = vmatpush1.msra.mxu0 0.0
  %776 = vmatprep.subr.mxu0 0.0
  %777 = vmatpush1.msra.mxu0 0.0
  %778 = vmatprep.subr.mxu0 0.0
  %779 = vmatpush1.msra.mxu0 0.0
  %780 = vmatprep.subr.mxu0 0.0
  %781 = vmatpush1.msra.mxu0 0.0
  %782 = vmatprep.subr.mxu0 0.0
  %783 = vmatpush1.msra.mxu0 0.0
  %784 = vmatprep.subr.mxu0 0.0
  %785 = vmatpush1.msra.mxu0 0.0
  %786 = vmatprep.subr.mxu0 0.0
  %787 = vmatpush1.msra.mxu0 0.0
  %788 = vmatprep.subr.mxu0 0.0
  %789 = vmatpush1.msra.mxu0 0.0
  %790 = vmatprep.subr.mxu0 0.0
  %791 = vmatpush1.msra.mxu0 0.0
  %792 = vmatprep.mubr.f32.mxu0 0.0
  %793 = vmatmul.mubr.f32.gmra.mrb[0].mxu0 %v705
  %v794 = vpop.f32.mrb[0].mxu0
  %v795 = vadd.f32 0.0, %v794
  %v796 = vpop.f32.mrb[0].mxu0
  %797 = vmatprep.mubr.f32.mxu0 0.0
  %798 = vmatmul.mubr.f32.gmra.mrb[0].mxu0 %v708
  %v799 = vpop.f32.mrb[0].mxu0
  %v800 = vadd.f32 0.0, %v799
  %v801 = vpop.f32.mrb[0].mxu0
  %802 = vmatprep.mubr.f32.mxu0 0.0
  %803 = vmatmul.mubr.f32.gmra.mrb[0].mxu0 %v711
  %v804 = vpop.f32.mrb[0].mxu0
  %v805 = vadd.f32 0.0, %v804
  %v806 = vpop.f32.mrb[0].mxu0
  %807 = vmatprep.mubr.f32.mxu0 0.0
  %808 = vmatmul.mubr.f32.gmra.mrb[0].mxu0 %v714
  %v809 = vpop.f32.mrb[0].mxu0
  %v810 = vadd.f32 0.0, %v809
  %v811 = vpop.f32.mrb[0].mxu0
  %812 = vmatprep.mubr.f32.mxu0 0.0
  %813 = vmatmul.mubr.f32.gmra.mrb[0].mxu0 %v717
  %v814 = vpop.f32.mrb[0].mxu0
  %v815 = vadd.f32 0.0, %v814
  %v816 = vpop.f32.mrb[0].mxu0
  %817 = vmatprep.mubr.f32.mxu0 0.0
  %818 = vmatmul.mubr.f32.gmra.mrb[0].mxu0 %v720
  %v819 = vpop.f32.mrb[0].mxu0
  %v820 = vadd.f32 0.0, %v819
  %v821 = vpop.f32.mrb[0].mxu0
  %822 = vmatprep.mubr.f32.mxu0 0.0
  %823 = vmatmul.mubr.f32.gmra.mrb[0].mxu0 %v723
  %v824 = vpop.f32.mrb[0].mxu0
  %v825 = vadd.f32 0.0, %v824
  %v826 = vpop.f32.mrb[0].mxu0
  %827 = vmatprep.mubr.f32.mxu0 0.0
  %828 = vmatmul.mubr.f32.gmra.mrb[0].mxu0 %v726
  %v829 = vpop.f32.mrb[0].mxu0
  %v830 = vadd.f32 0.0, %v829
  %v831 = vpop.f32.mrb[0].mxu0
  %832 = vdwg.mxu0
  %v834 = vsel %vm319, %v591, 0
  %v837 = vsel %vm319, %v592, 0
  %v840 = vsel %vm319, %v593, 0
  %v843 = vsel %vm319, %v594, 0
  %v846 = vsel %vm319, %v595, 0
  %v849 = vsel %vm319, %v596, 0
  %v852 = vsel %vm319, %v597, 0
  %v855 = vsel %vm319, %v598, 0
  %857 = vmatprep.subr.mxu0 0.0
  %858 = vmatpush1.msra.mxu0 %v311
  %859 = vmatprep.subr.mxu0 0.0
  %860 = vmatpush1.msra.mxu0 %v312
  %861 = vmatprep.subr.mxu0 0.0
  %862 = vmatpush1.msra.mxu0 %v313
  %863 = vmatprep.subr.mxu0 0.0
  %864 = vmatpush1.msra.mxu0 %v314
  %865 = vmatprep.subr.mxu0 0.0
  %866 = vmatpush1.msra.mxu0 0.0
  %867 = vmatprep.subr.mxu0 0.0
  %868 = vmatpush1.msra.mxu0 0.0
  %869 = vmatprep.subr.mxu0 0.0
  %870 = vmatpush1.msra.mxu0 0.0
  %871 = vmatprep.subr.mxu0 0.0
  %872 = vmatpush1.msra.mxu0 0.0
  %873 = vmatprep.subr.mxu0 0.0
  %874 = vmatpush1.msra.mxu0 0.0
  %875 = vmatprep.subr.mxu0 0.0
  %876 = vmatpush1.msra.mxu0 0.0
  %877 = vmatprep.subr.mxu0 0.0
  %878 = vmatpush1.msra.mxu0 0.0
  %879 = vmatprep.subr.mxu0 0.0
  %880 = vmatpush1.msra.mxu0 0.0
  %881 = vmatprep.subr.mxu0 0.0
  %882 = vmatpush1.msra.mxu0 0.0
  %883 = vmatprep.subr.mxu0 0.0
  %884 = vmatpush1.msra.mxu0 0.0
  %885 = vmatprep.subr.mxu0 0.0
  %886 = vmatpush1.msra.mxu0 0.0
  %887 = vmatprep.subr.mxu0 0.0
  %888 = vmatpush1.msra.mxu0 0.0
  %889 = vmatprep.subr.mxu0 0.0
  %890 = vmatpush1.msra.mxu0 0.0
  %891 = vmatprep.subr.mxu0 0.0
  %892 = vmatpush1.msra.mxu0 0.0
  %893 = vmatprep.subr.mxu0 0.0
  %894 = vmatpush1.msra.mxu0 0.0
  %895 = vmatprep.subr.mxu0 0.0
  %896 = vmatpush1.msra.mxu0 0.0
  %897 = vmatprep.subr.mxu0 0.0
  %898 = vmatpush1.msra.mxu0 0.0
  %899 = vmatprep.subr.mxu0 0.0
  %900 = vmatpush1.msra.mxu0 0.0
  %901 = vmatprep.subr.mxu0 0.0
  %902 = vmatpush1.msra.mxu0 0.0
  %903 = vmatprep.subr.mxu0 0.0
  %904 = vmatpush1.msra.mxu0 0.0
  %905 = vmatprep.subr.mxu0 0.0
  %906 = vmatpush1.msra.mxu0 0.0
  %907 = vmatprep.subr.mxu0 0.0
  %908 = vmatpush1.msra.mxu0 0.0
  %909 = vmatprep.subr.mxu0 0.0
  %910 = vmatpush1.msra.mxu0 0.0
  %911 = vmatprep.subr.mxu0 0.0
  %912 = vmatpush1.msra.mxu0 0.0
  %913 = vmatprep.subr.mxu0 0.0
  %914 = vmatpush1.msra.mxu0 0.0
  %915 = vmatprep.subr.mxu0 0.0
  %916 = vmatpush1.msra.mxu0 0.0
  %917 = vmatprep.subr.mxu0 0.0
  %918 = vmatpush1.msra.mxu0 0.0
  %919 = vmatprep.subr.mxu0 0.0
  %920 = vmatpush1.msra.mxu0 0.0
  %921 = vmatprep.mubr.f32.mxu0 0.0
  %922 = vmatmul.mubr.f32.gmra.mrb[0].mxu0 %v834
  %v923 = vpop.f32.mrb[0].mxu0
  %v924 = vadd.f32 %v795, %v923
  %v925 = vpop.f32.mrb[0].mxu0
  %926 = vmatprep.mubr.f32.mxu0 0.0
  %927 = vmatmul.mubr.f32.gmra.mrb[0].mxu0 %v837
  %v928 = vpop.f32.mrb[0].mxu0
  %v929 = vadd.f32 %v800, %v928
  %v930 = vpop.f32.mrb[0].mxu0
  %931 = vmatprep.mubr.f32.mxu0 0.0
  %932 = vmatmul.mubr.f32.gmra.mrb[0].mxu0 %v840
  %v933 = vpop.f32.mrb[0].mxu0
  %v934 = vadd.f32 %v805, %v933
  %v935 = vpop.f32.mrb[0].mxu0
  %936 = vmatprep.mubr.f32.mxu0 0.0
  %937 = vmatmul.mubr.f32.gmra.mrb[0].mxu0 %v843
  %v938 = vpop.f32.mrb[0].mxu0
  %v939 = vadd.f32 %v810, %v938
  %v940 = vpop.f32.mrb[0].mxu0
  %941 = vmatprep.mubr.f32.mxu0 0.0
  %942 = vmatmul.mubr.f32.gmra.mrb[0].mxu0 %v846
  %v943 = vpop.f32.mrb[0].mxu0
  %v944 = vadd.f32 %v815, %v943
  %v945 = vpop.f32.mrb[0].mxu0
  %946 = vmatprep.mubr.f32.mxu0 0.0
  %947 = vmatmul.mubr.f32.gmra.mrb[0].mxu0 %v849
  %v948 = vpop.f32.mrb[0].mxu0
  %v949 = vadd.f32 %v820, %v948
  %v950 = vpop.f32.mrb[0].mxu0
  %951 = vmatprep.mubr.f32.mxu0 0.0
  %952 = vmatmul.mubr.f32.gmra.mrb[0].mxu0 %v852
  %v953 = vpop.f32.mrb[0].mxu0
  %v954 = vadd.f32 %v825, %v953
  %v955 = vpop.f32.mrb[0].mxu0
  %956 = vmatprep.mubr.f32.mxu0 0.0
  %957 = vmatmul.mubr.f32.gmra.mrb[0].mxu0 %v855
  %v958 = vpop.f32.mrb[0].mxu0
  %v959 = vadd.f32 %v830, %v958
  %v960 = vpop.f32.mrb[0].mxu0
  %961 = vdwg.mxu0
  %v962 = vadd.f32 %v924, %v582
  %v963 = vadd.f32 %v929, %v582
  %v964 = vadd.f32 %v934, %v582
  %v965 = vadd.f32 %v939, %v582
  %v966 = vadd.f32 %v944, %v582
  %v967 = vadd.f32 %v949, %v582
  %v968 = vadd.f32 %v954, %v582
  %v969 = vadd.f32 %v959, %v582
  %v970 = vmax.f32 %v962, 0.0
  %v971 = vmax.f32 %v963, 0.0
  %v972 = vmax.f32 %v964, 0.0
  %v973 = vmax.f32 %v965, 0.0
  %v974 = vmax.f32 %v966, 0.0
  %v975 = vmax.f32 %v967, 0.0
  %v976 = vmax.f32 %v968, 0.0
  %v977 = vmax.f32 %v969, 0.0
  %978 = vmatprep.subr.mxu0 0.0
  %979 = vmatpush1.msra.mxu0 %v970
  %980 = vmatprep.subr.mxu0 0.0
  %981 = vmatpush1.msra.mxu0 %v971
  %982 = vmatprep.subr.mxu0 0.0
  %983 = vmatpush1.msra.mxu0 %v972
  %984 = vmatprep.subr.mxu0 0.0
  %985 = vmatpush1.msra.mxu0 %v973
  %986 = vmatprep.subr.mxu0 0.0
  %987 = vmatpush1.msra.mxu0 %v974
  %988 = vmatprep.subr.mxu0 0.0
  %989 = vmatpush1.msra.mxu0 %v975
  %990 = vmatprep.subr.mxu0 0.0
  %991 = vmatpush1.msra.mxu0 %v976
  %992 = vmatprep.subr.mxu0 0.0
  %993 = vmatpush1.msra.mxu0 %v977
  %994 = vmatprep.subr.mxu0 0.0
  %995 = vmatpush1.msra.mxu0 0.0
  %996 = vmatprep.subr.mxu0 0.0
  %997 = vmatpush1.msra.mxu0 0.0
  %998 = vmatprep.subr.mxu0 0.0
  %999 = vmatpush1.msra.mxu0 0.0
  %1000 = vmatprep.subr.mxu0 0.0
  %1001 = vmatpush1.msra.mxu0 0.0
  %1002 = vmatprep.subr.mxu0 0.0
  %1003 = vmatpush1.msra.mxu0 0.0
  %1004 = vmatprep.subr.mxu0 0.0
  %1005 = vmatpush1.msra.mxu0 0.0
  %1006 = vmatprep.subr.mxu0 0.0
  %1007 = vmatpush1.msra.mxu0 0.0
  %1008 = vmatprep.subr.mxu0 0.0
  %1009 = vmatpush1.msra.mxu0 0.0
  %1010 = vmatprep.subr.mxu0 0.0
  %1011 = vmatpush1.msra.mxu0 0.0
  %1012 = vmatprep.subr.mxu0 0.0
  %1013 = vmatpush1.msra.mxu0 0.0
  %1014 = vmatprep.subr.mxu0 0.0
  %1015 = vmatpush1.msra.mxu0 0.0
  %1016 = vmatprep.subr.mxu0 0.0
  %1017 = vmatpush1.msra.mxu0 0.0
  %1018 = vmatprep.subr.mxu0 0.0
  %1019 = vmatpush1.msra.mxu0 0.0
  %1020 = vmatprep.subr.mxu0 0.0
  %1021 = vmatpush1.msra.mxu0 0.0
  %1022 = vmatprep.subr.mxu0 0.0
  %1023 = vmatpush1.msra.mxu0 0.0
  %1024 = vmatprep.subr.mxu0 0.0
  %1025 = vmatpush1.msra.mxu0 0.0
  %1026 = vmatprep.subr.mxu0 0.0
  %1027 = vmatpush1.msra.mxu0 0.0
  %1028 = vmatprep.subr.mxu0 0.0
  %1029 = vmatpush1.msra.mxu0 0.0
  %1030 = vmatprep.subr.mxu0 0.0
  %1031 = vmatpush1.msra.mxu0 0.0
  %1032 = vmatprep.subr.mxu0 0.0
  %1033 = vmatpush1.msra.mxu0 0.0
  %1034 = vmatprep.subr.mxu0 0.0
  %1035 = vmatpush1.msra.mxu0 0.0
  %1036 = vmatprep.subr.mxu0 0.0
  %1037 = vmatpush1.msra.mxu0 0.0
  %1038 = vmatprep.subr.mxu0 0.0
  %1039 = vmatpush1.msra.mxu0 0.0
  %1040 = vmatprep.subr.mxu0 0.0
  %1041 = vmatpush1.msra.mxu0 0.0
  %1042 = vmatprep.mubr.f32.mxu0 0.0
  %1043 = vmatmul.mubr.f32.gmra.mrb[0].mxu0 %v183
  %v1044 = vpop.f32.mrb[0].mxu0
  %v1045 = vadd.f32 0.0, %v1044
  %v1046 = vpop.f32.mrb[0].mxu0
  %1047 = vmatprep.mubr.f32.mxu0 0.0
  %1048 = vmatmul.mubr.f32.gmra.mrb[0].mxu0 %v186
  %v1049 = vpop.f32.mrb[0].mxu0
  %v1050 = vadd.f32 0.0, %v1049
  %v1051 = vpop.f32.mrb[0].mxu0
  %1052 = vmatprep.mubr.f32.mxu0 0.0
  %1053 = vmatmul.mubr.f32.gmra.mrb[0].mxu0 %v189
  %v1054 = vpop.f32.mrb[0].mxu0
  %v1055 = vadd.f32 0.0, %v1054
  %v1056 = vpop.f32.mrb[0].mxu0
  %1057 = vmatprep.mubr.f32.mxu0 0.0
  %1058 = vmatmul.mubr.f32.gmra.mrb[0].mxu0 %v192
  %v1059 = vpop.f32.mrb[0].mxu0
  %v1060 = vadd.f32 0.0, %v1059
  %v1061 = vpop.f32.mrb[0].mxu0
  %1062 = vmatprep.mubr.f32.mxu0 0.0
  %1063 = vmatmul.mubr.f32.gmra.mrb[0].mxu0 %v195
  %v1064 = vpop.f32.mrb[0].mxu0
  %v1065 = vadd.f32 0.0, %v1064
  %v1066 = vpop.f32.mrb[0].mxu0
  %1067 = vmatprep.mubr.f32.mxu0 0.0
  %1068 = vmatmul.mubr.f32.gmra.mrb[0].mxu0 %v198
  %v1069 = vpop.f32.mrb[0].mxu0
  %v1070 = vadd.f32 0.0, %v1069
  %v1071 = vpop.f32.mrb[0].mxu0
  %1072 = vmatprep.mubr.f32.mxu0 0.0
  %1073 = vmatmul.mubr.f32.gmra.mrb[0].mxu0 %v201
  %v1074 = vpop.f32.mrb[0].mxu0
  %v1075 = vadd.f32 0.0, %v1074
  %v1076 = vpop.f32.mrb[0].mxu0
  %1077 = vmatprep.mubr.f32.mxu0 0.0
  %1078 = vmatmul.mubr.f32.gmra.mrb[0].mxu0 %v204
  %v1079 = vpop.f32.mrb[0].mxu0
  %v1080 = vadd.f32 0.0, %v1079
  %v1081 = vpop.f32.mrb[0].mxu0
  %1082 = vdwg.mxu0
  %v1084 = vsel %vm319, %v1045, 0
  %v1087 = vsel %vm319, %v1050, 0
  %v1090 = vsel %vm319, %v1055, 0
  %v1093 = vsel %vm319, %v1060, 0
  %v1096 = vsel %vm319, %v1065, 0
  %v1099 = vsel %vm319, %v1070, 0
  %v1102 = vsel %vm319, %v1075, 0
  %v1105 = vsel %vm319, %v1080, 0
  %1107 = vmatprep.subr.mxu0 0.0
  %1108 = vmatpush1.msra.mxu0 %v315
  %1109 = vmatprep.subr.mxu0 0.0
  %1110 = vmatpush1.msra.mxu0 %v316
  %1111 = vmatprep.subr.mxu0 0.0
  %1112 = vmatpush1.msra.mxu0 %v317
  %1113 = vmatprep.subr.mxu0 0.0
  %1114 = vmatpush1.msra.mxu0 %v318
  %1115 = vmatprep.subr.mxu0 0.0
  %1116 = vmatpush1.msra.mxu0 0.0
  %1117 = vmatprep.subr.mxu0 0.0
  %1118 = vmatpush1.msra.mxu0 0.0
  %1119 = vmatprep.subr.mxu0 0.0
  %1120 = vmatpush1.msra.mxu0 0.0
  %1121 = vmatprep.subr.mxu0 0.0
  %1122 = vmatpush1.msra.mxu0 0.0
  %1123 = vmatprep.subr.mxu0 0.0
  %1124 = vmatpush1.msra.mxu0 0.0
  %1125 = vmatprep.subr.mxu0 0.0
  %1126 = vmatpush1.msra.mxu0 0.0
  %1127 = vmatprep.subr.mxu0 0.0
  %1128 = vmatpush1.msra.mxu0 0.0
  %1129 = vmatprep.subr.mxu0 0.0
  %1130 = vmatpush1.msra.mxu0 0.0
  %1131 = vmatprep.subr.mxu0 0.0
  %1132 = vmatpush1.msra.mxu0 0.0
  %1133 = vmatprep.subr.mxu0 0.0
  %1134 = vmatpush1.msra.mxu0 0.0
  %1135 = vmatprep.subr.mxu0 0.0
  %1136 = vmatpush1.msra.mxu0 0.0
  %1137 = vmatprep.subr.mxu0 0.0
  %1138 = vmatpush1.msra.mxu0 0.0
  %1139 = vmatprep.subr.mxu0 0.0
  %1140 = vmatpush1.msra.mxu0 0.0
  %1141 = vmatprep.subr.mxu0 0.0
  %1142 = vmatpush1.msra.mxu0 0.0
  %1143 = vmatprep.subr.mxu0 0.0
  %1144 = vmatpush1.msra.mxu0 0.0
  %1145 = vmatprep.subr.mxu0 0.0
  %1146 = vmatpush1.msra.mxu0 0.0
  %1147 = vmatprep.subr.mxu0 0.0
  %1148 = vmatpush1.msra.mxu0 0.0
  %1149 = vmatprep.subr.mxu0 0.0
  %1150 = vmatpush1.msra.mxu0 0.0
  %1151 = vmatprep.subr.mxu0 0.0
  %1152 = vmatpush1.msra.mxu0 0.0
  %1153 = vmatprep.subr.mxu0 0.0
  %1154 = vmatpush1.msra.mxu0 0.0
  %1155 = vmatprep.subr.mxu0 0.0
  %1156 = vmatpush1.msra.mxu0 0.0
  %1157 = vmatprep.subr.mxu0 0.0
  %1158 = vmatpush1.msra.mxu0 0.0
  %1159 = vmatprep.subr.mxu0 0.0
  %1160 = vmatpush1.msra.mxu0 0.0
  %1161 = vmatprep.subr.mxu0 0.0
  %1162 = vmatpush1.msra.mxu0 0.0
  %1163 = vmatprep.subr.mxu0 0.0
  %1164 = vmatpush1.msra.mxu0 0.0
  %1165 = vmatprep.subr.mxu0 0.0
  %1166 = vmatpush1.msra.mxu0 0.0
  %1167 = vmatprep.subr.mxu0 0.0
  %1168 = vmatpush1.msra.mxu0 0.0
  %1169 = vmatprep.subr.mxu0 0.0
  %1170 = vmatpush1.msra.mxu0 0.0
  %1171 = vmatprep.mubr.f32.mxu0 0.0
  %1172 = vmatmul.mubr.f32.gmra.mrb[0].mxu0 %v1084
  %v1173 = vpop.f32.mrb[0].mxu0
  %v1174 = vadd.f32 0.0, %v1173
  %v1175 = vpop.f32.mrb[0].mxu0
  %1176 = vmatprep.mubr.f32.mxu0 0.0
  %1177 = vmatmul.mubr.f32.gmra.mrb[0].mxu0 %v1087
  %v1178 = vpop.f32.mrb[0].mxu0
  %v1179 = vadd.f32 0.0, %v1178
  %v1180 = vpop.f32.mrb[0].mxu0
  %1181 = vmatprep.mubr.f32.mxu0 0.0
  %1182 = vmatmul.mubr.f32.gmra.mrb[0].mxu0 %v1090
  %v1183 = vpop.f32.mrb[0].mxu0
  %v1184 = vadd.f32 0.0, %v1183
  %v1185 = vpop.f32.mrb[0].mxu0
  %1186 = vmatprep.mubr.f32.mxu0 0.0
  %1187 = vmatmul.mubr.f32.gmra.mrb[0].mxu0 %v1093
  %v1188 = vpop.f32.mrb[0].mxu0
  %v1189 = vadd.f32 0.0, %v1188
  %v1190 = vpop.f32.mrb[0].mxu0
  %1191 = vmatprep.mubr.f32.mxu0 0.0
  %1192 = vmatmul.mubr.f32.gmra.mrb[0].mxu0 %v1096
  %v1193 = vpop.f32.mrb[0].mxu0
  %v1194 = vadd.f32 0.0, %v1193
  %v1195 = vpop.f32.mrb[0].mxu0
  %1196 = vmatprep.mubr.f32.mxu0 0.0
  %1197 = vmatmul.mubr.f32.gmra.mrb[0].mxu0 %v1099
  %v1198 = vpop.f32.mrb[0].mxu0
  %v1199 = vadd.f32 0.0, %v1198
  %v1200 = vpop.f32.mrb[0].mxu0
  %1201 = vmatprep.mubr.f32.mxu0 0.0
  %1202 = vmatmul.mubr.f32.gmra.mrb[0].mxu0 %v1102
  %v1203 = vpop.f32.mrb[0].mxu0
  %v1204 = vadd.f32 0.0, %v1203
  %v1205 = vpop.f32.mrb[0].mxu0
  %1206 = vmatprep.mubr.f32.mxu0 0.0
  %1207 = vmatmul.mubr.f32.gmra.mrb[0].mxu0 %v1105
  %v1208 = vpop.f32.mrb[0].mxu0
  %v1209 = vadd.f32 0.0, %v1208
  %v1210 = vpop.f32.mrb[0].mxu0
  %1211 = vdwg.mxu0
  %v1213 = vsel %vm319, %v970, 0
  %v1216 = vsel %vm319, %v971, 0
  %v1219 = vsel %vm319, %v972, 0
  %v1222 = vsel %vm319, %v973, 0
  %v1225 = vsel %vm319, %v974, 0
  %v1228 = vsel %vm319, %v975, 0
  %v1231 = vsel %vm319, %v976, 0
  %v1234 = vsel %vm319, %v977, 0
  %1236 = vmatprep.subr.mxu0 0.0
  %1237 = vmatpush1.msra.mxu0 %v311
  %1238 = vmatprep.subr.mxu0 0.0
  %1239 = vmatpush1.msra.mxu0 %v312
  %1240 = vmatprep.subr.mxu0 0.0
  %1241 = vmatpush1.msra.mxu0 %v313
  %1242 = vmatprep.subr.mxu0 0.0
  %1243 = vmatpush1.msra.mxu0 %v314
  %1244 = vmatprep.subr.mxu0 0.0
  %1245 = vmatpush1.msra.mxu0 0.0
  %1246 = vmatprep.subr.mxu0 0.0
  %1247 = vmatpush1.msra.mxu0 0.0
  %1248 = vmatprep.subr.mxu0 0.0
  %1249 = vmatpush1.msra.mxu0 0.0
  %1250 = vmatprep.subr.mxu0 0.0
  %1251 = vmatpush1.msra.mxu0 0.0
  %1252 = vmatprep.subr.mxu0 0.0
  %1253 = vmatpush1.msra.mxu0 0.0
  %1254 = vmatprep.subr.mxu0 0.0
  %1255 = vmatpush1.msra.mxu0 0.0
  %1256 = vmatprep.subr.mxu0 0.0
  %1257 = vmatpush1.msra.mxu0 0.0
  %1258 = vmatprep.subr.mxu0 0.0
  %1259 = vmatpush1.msra.mxu0 0.0
  %1260 = vmatprep.subr.mxu0 0.0
  %1261 = vmatpush1.msra.mxu0 0.0
  %1262 = vmatprep.subr.mxu0 0.0
  %1263 = vmatpush1.msra.mxu0 0.0
  %1264 = vmatprep.subr.mxu0 0.0
  %1265 = vmatpush1.msra.mxu0 0.0
  %1266 = vmatprep.subr.mxu0 0.0
  %1267 = vmatpush1.msra.mxu0 0.0
  %1268 = vmatprep.subr.mxu0 0.0
  %1269 = vmatpush1.msra.mxu0 0.0
  %1270 = vmatprep.subr.mxu0 0.0
  %1271 = vmatpush1.msra.mxu0 0.0
  %1272 = vmatprep.subr.mxu0 0.0
  %1273 = vmatpush1.msra.mxu0 0.0
  %1274 = vmatprep.subr.mxu0 0.0
  %1275 = vmatpush1.msra.mxu0 0.0
  %1276 = vmatprep.subr.mxu0 0.0
  %1277 = vmatpush1.msra.mxu0 0.0
  %1278 = vmatprep.subr.mxu0 0.0
  %1279 = vmatpush1.msra.mxu0 0.0
  %1280 = vmatprep.subr.mxu0 0.0
  %1281 = vmatpush1.msra.mxu0 0.0
  %1282 = vmatprep.subr.mxu0 0.0
  %1283 = vmatpush1.msra.mxu0 0.0
  %1284 = vmatprep.subr.mxu0 0.0
  %1285 = vmatpush1.msra.mxu0 0.0
  %1286 = vmatprep.subr.mxu0 0.0
  %1287 = vmatpush1.msra.mxu0 0.0
  %1288 = vmatprep.subr.mxu0 0.0
  %1289 = vmatpush1.msra.mxu0 0.0
  %1290 = vmatprep.subr.mxu0 0.0
  %1291 = vmatpush1.msra.mxu0 0.0
  %1292 = vmatprep.subr.mxu0 0.0
  %1293 = vmatpush1.msra.mxu0 0.0
  %1294 = vmatprep.subr.mxu0 0.0
  %1295 = vmatpush1.msra.mxu0 0.0
  %1296 = vmatprep.subr.mxu0 0.0
  %1297 = vmatpush1.msra.mxu0 0.0
  %1298 = vmatprep.subr.mxu0 0.0
  %1299 = vmatpush1.msra.mxu0 0.0
  %1300 = vmatprep.mubr.f32.mxu0 0.0
  %1301 = vmatmul.mubr.f32.gmra.mrb[0].mxu0 %v1213
  %v1302 = vpop.f32.mrb[0].mxu0
  %v1303 = vadd.f32 %v1174, %v1302
  %v1304 = vpop.f32.mrb[0].mxu0
  %1305 = vmatprep.mubr.f32.mxu0 0.0
  %1306 = vmatmul.mubr.f32.gmra.mrb[0].mxu0 %v1216
  %v1307 = vpop.f32.mrb[0].mxu0
  %v1308 = vadd.f32 %v1179, %v1307
  %v1309 = vpop.f32.mrb[0].mxu0
  %1310 = vmatprep.mubr.f32.mxu0 0.0
  %1311 = vmatmul.mubr.f32.gmra.mrb[0].mxu0 %v1219
  %v1312 = vpop.f32.mrb[0].mxu0
  %v1313 = vadd.f32 %v1184, %v1312
  %v1314 = vpop.f32.mrb[0].mxu0
  %1315 = vmatprep.mubr.f32.mxu0 0.0
  %1316 = vmatmul.mubr.f32.gmra.mrb[0].mxu0 %v1222
  %v1317 = vpop.f32.mrb[0].mxu0
  %v1318 = vadd.f32 %v1189, %v1317
  %v1319 = vpop.f32.mrb[0].mxu0
  %1320 = vmatprep.mubr.f32.mxu0 0.0
  %1321 = vmatmul.mubr.f32.gmra.mrb[0].mxu0 %v1225
  %v1322 = vpop.f32.mrb[0].mxu0
  %v1323 = vadd.f32 %v1194, %v1322
  %v1324 = vpop.f32.mrb[0].mxu0
  %1325 = vmatprep.mubr.f32.mxu0 0.0
  %1326 = vmatmul.mubr.f32.gmra.mrb[0].mxu0 %v1228
  %v1327 = vpop.f32.mrb[0].mxu0
  %v1328 = vadd.f32 %v1199, %v1327
  %v1329 = vpop.f32.mrb[0].mxu0
  %1330 = vmatprep.mubr.f32.mxu0 0.0
  %1331 = vmatmul.mubr.f32.gmra.mrb[0].mxu0 %v1231
  %v1332 = vpop.f32.mrb[0].mxu0
  %v1333 = vadd.f32 %v1204, %v1332
  %v1334 = vpop.f32.mrb[0].mxu0
  %1335 = vmatprep.mubr.f32.mxu0 0.0
  %1336 = vmatmul.mubr.f32.gmra.mrb[0].mxu0 %v1234
  %v1337 = vpop.f32.mrb[0].mxu0
  %v1338 = vadd.f32 %v1209, %v1337
  %v1339 = vpop.f32.mrb[0].mxu0
  %1340 = vdwg.mxu0
  %v1341 = vadd.f32 %v1303, %v582
  %v1342 = vadd.f32 %v1308, %v582
  %v1343 = vadd.f32 %v1313, %v582
  %v1344 = vadd.f32 %v1318, %v582
  %v1345 = vadd.f32 %v1323, %v582
  %v1346 = vadd.f32 %v1328, %v582
  %v1347 = vadd.f32 %v1333, %v582
  %v1348 = vadd.f32 %v1338, %v582
  %v1349 = vmax.f32 %v1341, 0.0
  %v1350 = vmax.f32 %v1342, 0.0
  %v1351 = vmax.f32 %v1343, 0.0
  %v1352 = vmax.f32 %v1344, 0.0
  %v1353 = vmax.f32 %v1345, 0.0
  %v1354 = vmax.f32 %v1346, 0.0
  %v1355 = vmax.f32 %v1347, 0.0
  %v1356 = vmax.f32 %v1348, 0.0
  %v1357 = vld [vmem:[%s2] sm:$0xff]
  %v1358 = vld [vmem:[%s2 + $0x8] sm:$0xff]
  %v1359 = vld [vmem:[%s2 + $0x10] sm:$0xff]
  %v1360 = vld [vmem:[%s2 + $0x18] sm:$0xff]
  %v1362 = vsel %vm181, %v1357, 0
  %v1365 = vsel %vm181, %v1358, 0
  %v1368 = vsel %vm181, %v1359, 0
  %v1371 = vsel %vm181, %v1360, 0
  %1373 = vmatprep.subr.mxu0 0.0
  %1374 = vmatpush1.msra.mxu0 %v1349
  %1375 = vmatprep.subr.mxu0 0.0
  %1376 = vmatpush1.msra.mxu0 %v1350
  %1377 = vmatprep.subr.mxu0 0.0
  %1378 = vmatpush1.msra.mxu0 %v1351
  %1379 = vmatprep.subr.mxu0 0.0
  %1380 = vmatpush1.msra.mxu0 %v1352
  %1381 = vmatprep.subr.mxu0 0.0
  %1382 = vmatpush1.msra.mxu0 %v1353
  %1383 = vmatprep.subr.mxu0 0.0
  %1384 = vmatpush1.msra.mxu0 %v1354
  %1385 = vmatprep.subr.mxu0 0.0
  %1386 = vmatpush1.msra.mxu0 %v1355
  %1387 = vmatprep.subr.mxu0 0.0
  %1388 = vmatpush1.msra.mxu0 %v1356
  %1389 = vmatprep.subr.mxu0 0.0
  %1390 = vmatpush1.msra.mxu0 0.0
  %1391 = vmatprep.subr.mxu0 0.0
  %1392 = vmatpush1.msra.mxu0 0.0
  %1393 = vmatprep.subr.mxu0 0.0
  %1394 = vmatpush1.msra.mxu0 0.0
  %1395 = vmatprep.subr.mxu0 0.0
  %1396 = vmatpush1.msra.mxu0 0.0
  %1397 = vmatprep.subr.mxu0 0.0
  %1398 = vmatpush1.msra.mxu0 0.0
  %1399 = vmatprep.subr.mxu0 0.0
  %1400 = vmatpush1.msra.mxu0 0.0
  %1401 = vmatprep.subr.mxu0 0.0
  %1402 = vmatpush1.msra.mxu0 0.0
  %1403 = vmatprep.subr.mxu0 0.0
  %1404 = vmatpush1.msra.mxu0 0.0
  %1405 = vmatprep.subr.mxu0 0.0
  %1406 = vmatpush1.msra.mxu0 0.0
  %1407 = vmatprep.subr.mxu0 0.0
  %1408 = vmatpush1.msra.mxu0 0.0
  %1409 = vmatprep.subr.mxu0 0.0
  %1410 = vmatpush1.msra.mxu0 0.0
  %1411 = vmatprep.subr.mxu0 0.0
  %1412 = vmatpush1.msra.mxu0 0.0
  %1413 = vmatprep.subr.mxu0 0.0
  %1414 = vmatpush1.msra.mxu0 0.0
  %1415 = vmatprep.subr.mxu0 0.0
  %1416 = vmatpush1.msra.mxu0 0.0
  %1417 = vmatprep.subr.mxu0 0.0
  %1418 = vmatpush1.msra.mxu0 0.0
  %1419 = vmatprep.subr.mxu0 0.0
  %1420 = vmatpush1.msra.mxu0 0.0
  %1421 = vmatprep.subr.mxu0 0.0
  %1422 = vmatpush1.msra.mxu0 0.0
  %1423 = vmatprep.subr.mxu0 0.0
  %1424 = vmatpush1.msra.mxu0 0.0
  %1425 = vmatprep.subr.mxu0 0.0
  %1426 = vmatpush1.msra.mxu0 0.0
  %1427 = vmatprep.subr.mxu0 0.0
  %1428 = vmatpush1.msra.mxu0 0.0
  %1429 = vmatprep.subr.mxu0 0.0
  %1430 = vmatpush1.msra.mxu0 0.0
  %1431 = vmatprep.subr.mxu0 0.0
  %1432 = vmatpush1.msra.mxu0 0.0
  %1433 = vmatprep.subr.mxu0 0.0
  %1434 = vmatpush1.msra.mxu0 0.0
  %1435 = vmatprep.subr.mxu0 0.0
  %1436 = vmatpush1.msra.mxu0 0.0
  %1437 = vmatprep.mubr.f32.mxu0 0.0
  %1438 = vmatmul.mubr.f32.gmra.mrb[0].mxu0 %v1362
  %v1439 = vpop.f32.mrb[0].mxu0
  %v1440 = vadd.f32 0.0, %v1439
  %v1441 = vpop.f32.mrb[0].mxu0
  %1442 = vmatprep.mubr.f32.mxu0 0.0
  %1443 = vmatmul.mubr.f32.gmra.mrb[0].mxu0 %v1365
  %v1444 = vpop.f32.mrb[0].mxu0
  %v1445 = vadd.f32 0.0, %v1444
  %v1446 = vpop.f32.mrb[0].mxu0
  %1447 = vmatprep.mubr.f32.mxu0 0.0
  %1448 = vmatmul.mubr.f32.gmra.mrb[0].mxu0 %v1368
  %v1449 = vpop.f32.mrb[0].mxu0
  %v1450 = vadd.f32 0.0, %v1449
  %v1451 = vpop.f32.mrb[0].mxu0
  %1452 = vmatprep.mubr.f32.mxu0 0.0
  %1453 = vmatmul.mubr.f32.gmra.mrb[0].mxu0 %v1371
  %v1454 = vpop.f32.mrb[0].mxu0
  %v1455 = vadd.f32 0.0, %v1454
  %v1456 = vpop.f32.mrb[0].mxu0
  %1457 = vdwg.mxu0
  %v1458 = vld [vmem:[%s4] sm:$0xff]
  %v1459 = vld [vmem:[%s4 + $0x8] sm:$0xff]
  %v1460 = vld [vmem:[%s4 + $0x10] sm:$0xff]
  %v1461 = vld [vmem:[%s4 + $0x18] sm:$0xff]
  %v1462 = vld [vmem:[%s4 + $0x20] sm:$0xff]
  %v1463 = vld [vmem:[%s4 + $0x28] sm:$0xff]
  %v1464 = vld [vmem:[%s4 + $0x30] sm:$0xff]
  %v1465 = vld [vmem:[%s4 + $0x38] sm:$0xff]
  %v1467 = vsel %vm319, %v1445, 0
  %1469 = vmatprep.subr.mxu0 0.0
  %1470 = vmatpush1.msra.mxu0 %v1462
  %1471 = vmatprep.subr.mxu0 0.0
  %1472 = vmatpush1.msra.mxu0 %v1463
  %1473 = vmatprep.subr.mxu0 0.0
  %1474 = vmatpush1.msra.mxu0 %v1464
  %1475 = vmatprep.subr.mxu0 0.0
  %1476 = vmatpush1.msra.mxu0 %v1465
  %1477 = vmatprep.subr.mxu0 0.0
  %1478 = vmatpush1.msra.mxu0 0.0
  %1479 = vmatprep.subr.mxu0 0.0
  %1480 = vmatpush1.msra.mxu0 0.0
  %1481 = vmatprep.subr.mxu0 0.0
  %1482 = vmatpush1.msra.mxu0 0.0
  %1483 = vmatprep.subr.mxu0 0.0
  %1484 = vmatpush1.msra.mxu0 0.0
  %1485 = vmatprep.subr.mxu0 0.0
  %1486 = vmatpush1.msra.mxu0 0.0
  %1487 = vmatprep.subr.mxu0 0.0
  %1488 = vmatpush1.msra.mxu0 0.0
  %1489 = vmatprep.subr.mxu0 0.0
  %1490 = vmatpush1.msra.mxu0 0.0
  %1491 = vmatprep.subr.mxu0 0.0
  %1492 = vmatpush1.msra.mxu0 0.0
  %1493 = vmatprep.subr.mxu0 0.0
  %1494 = vmatpush1.msra.mxu0 0.0
  %1495 = vmatprep.subr.mxu0 0.0
  %1496 = vmatpush1.msra.mxu0 0.0
  %1497 = vmatprep.subr.mxu0 0.0
  %1498 = vmatpush1.msra.mxu0 0.0
  %1499 = vmatprep.subr.mxu0 0.0
  %1500 = vmatpush1.msra.mxu0 0.0
  %1501 = vmatprep.subr.mxu0 0.0
  %1502 = vmatpush1.msra.mxu0 0.0
  %1503 = vmatprep.subr.mxu0 0.0
  %1504 = vmatpush1.msra.mxu0 0.0
  %1505 = vmatprep.subr.mxu0 0.0
  %1506 = vmatpush1.msra.mxu0 0.0
  %1507 = vmatprep.subr.mxu0 0.0
  %1508 = vmatpush1.msra.mxu0 0.0
  %1509 = vmatprep.subr.mxu0 0.0
  %1510 = vmatpush1.msra.mxu0 0.0
  %1511 = vmatprep.subr.mxu0 0.0
  %1512 = vmatpush1.msra.mxu0 0.0
  %1513 = vmatprep.subr.mxu0 0.0
  %1514 = vmatpush1.msra.mxu0 0.0
  %1515 = vmatprep.subr.mxu0 0.0
  %1516 = vmatpush1.msra.mxu0 0.0
  %1517 = vmatprep.subr.mxu0 0.0
  %1518 = vmatpush1.msra.mxu0 0.0
  %1519 = vmatprep.subr.mxu0 0.0
  %1520 = vmatpush1.msra.mxu0 0.0
  %1521 = vmatprep.subr.mxu0 0.0
  %1522 = vmatpush1.msra.mxu0 0.0
  %1523 = vmatprep.subr.mxu0 0.0
  %1524 = vmatpush1.msra.mxu0 0.0
  %1525 = vmatprep.subr.mxu0 0.0
  %1526 = vmatpush1.msra.mxu0 0.0
  %1527 = vmatprep.subr.mxu0 0.0
  %1528 = vmatpush1.msra.mxu0 0.0
  %1529 = vmatprep.subr.mxu0 0.0
  %1530 = vmatpush1.msra.mxu0 0.0
  %1531 = vmatprep.subr.mxu0 0.0
  %1532 = vmatpush1.msra.mxu0 0.0
  %1533 = vmatprep.mubr.f32.mxu0 0.0
  %1534 = vmatmul.mubr.f32.gmra.mrb[0].mxu0 %v1467
  %v1535 = vpop.f32.mrb[0].mxu0
  %v1536 = vadd.f32 0.0, %v1535
  %v1537 = vpop.f32.mrb[0].mxu0
  %1538 = vdwg.mxu0
  %v1540 = vsel %vm319, %v1440, 0
  %1542 = vmatprep.subr.mxu0 0.0
  %1543 = vmatpush1.msra.mxu0 %v1458
  %1544 = vmatprep.subr.mxu0 0.0
  %1545 = vmatpush1.msra.mxu0 %v1459
  %1546 = vmatprep.subr.mxu0 0.0
  %1547 = vmatpush1.msra.mxu0 %v1460
  %1548 = vmatprep.subr.mxu0 0.0
  %1549 = vmatpush1.msra.mxu0 %v1461
  %1550 = vmatprep.subr.mxu0 0.0
  %1551 = vmatpush1.msra.mxu0 0.0
  %1552 = vmatprep.subr.mxu0 0.0
  %1553 = vmatpush1.msra.mxu0 0.0
  %1554 = vmatprep.subr.mxu0 0.0
  %1555 = vmatpush1.msra.mxu0 0.0
  %1556 = vmatprep.subr.mxu0 0.0
  %1557 = vmatpush1.msra.mxu0 0.0
  %1558 = vmatprep.subr.mxu0 0.0
  %1559 = vmatpush1.msra.mxu0 0.0
  %1560 = vmatprep.subr.mxu0 0.0
  %1561 = vmatpush1.msra.mxu0 0.0
  %1562 = vmatprep.subr.mxu0 0.0
  %1563 = vmatpush1.msra.mxu0 0.0
  %1564 = vmatprep.subr.mxu0 0.0
  %1565 = vmatpush1.msra.mxu0 0.0
  %1566 = vmatprep.subr.mxu0 0.0
  %1567 = vmatpush1.msra.mxu0 0.0
  %1568 = vmatprep.subr.mxu0 0.0
  %1569 = vmatpush1.msra.mxu0 0.0
  %1570 = vmatprep.subr.mxu0 0.0
  %1571 = vmatpush1.msra.mxu0 0.0
  %1572 = vmatprep.subr.mxu0 0.0
  %1573 = vmatpush1.msra.mxu0 0.0
  %1574 = vmatprep.subr.mxu0 0.0
  %1575 = vmatpush1.msra.mxu0 0.0
  %1576 = vmatprep.subr.mxu0 0.0
  %1577 = vmatpush1.msra.mxu0 0.0
  %1578 = vmatprep.subr.mxu0 0.0
  %1579 = vmatpush1.msra.mxu0 0.0
  %1580 = vmatprep.subr.mxu0 0.0
  %1581 = vmatpush1.msra.mxu0 0.0
  %1582 = vmatprep.subr.mxu0 0.0
  %1583 = vmatpush1.msra.mxu0 0.0
  %1584 = vmatprep.subr.mxu0 0.0
  %1585 = vmatpush1.msra.mxu0 0.0
  %1586 = vmatprep.subr.mxu0 0.0
  %1587 = vmatpush1.msra.mxu0 0.0
  %1588 = vmatprep.subr.mxu0 0.0
  %1589 = vmatpush1.msra.mxu0 0.0
  %1590 = vmatprep.subr.mxu0 0.0
  %1591 = vmatpush1.msra.mxu0 0.0
  %1592 = vmatprep.subr.mxu0 0.0
  %1593 = vmatpush1.msra.mxu0 0.0
  %1594 = vmatprep.subr.mxu0 0.0
  %1595 = vmatpush1.msra.mxu0 0.0
  %1596 = vmatprep.subr.mxu0 0.0
  %1597 = vmatpush1.msra.mxu0 0.0
  %1598 = vmatprep.subr.mxu0 0.0
  %1599 = vmatpush1.msra.mxu0 0.0
  %1600 = vmatprep.subr.mxu0 0.0
  %1601 = vmatpush1.msra.mxu0 0.0
  %1602 = vmatprep.subr.mxu0 0.0
  %1603 = vmatpush1.msra.mxu0 0.0
  %1604 = vmatprep.subr.mxu0 0.0
  %1605 = vmatpush1.msra.mxu0 0.0
  %1606 = vmatprep.mubr.f32.mxu0 0.0
  %1607 = vmatmul.mubr.f32.gmra.mrb[0].mxu0 %v1540
  %v1608 = vpop.f32.mrb[0].mxu0
  %v1609 = vadd.f32 %v1536, %v1608
  %v1610 = vpop.f32.mrb[0].mxu0
  %1611 = vdwg.mxu0
  %v1612 = vld [vmem:[%s4 + $0x40] sm:$0xff]
  %v1613 = vld [vmem:[%s4 + $0x48] sm:$0xff]
  %v1614 = vld [vmem:[%s4 + $0x50] sm:$0xff]
  %v1615 = vld [vmem:[%s4 + $0x58] sm:$0xff]
  %v1617 = vsel %vm319, %v1450, 0
  %1619 = vmatprep.subr.mxu0 0.0
  %1620 = vmatpush1.msra.mxu0 %v1612
  %1621 = vmatprep.subr.mxu0 0.0
  %1622 = vmatpush1.msra.mxu0 %v1613
  %1623 = vmatprep.subr.mxu0 0.0
  %1624 = vmatpush1.msra.mxu0 %v1614
  %1625 = vmatprep.subr.mxu0 0.0
  %1626 = vmatpush1.msra.mxu0 %v1615
  %1627 = vmatprep.subr.mxu0 0.0
  %1628 = vmatpush1.msra.mxu0 0.0
  %1629 = vmatprep.subr.mxu0 0.0
  %1630 = vmatpush1.msra.mxu0 0.0
  %1631 = vmatprep.subr.mxu0 0.0
  %1632 = vmatpush1.msra.mxu0 0.0
  %1633 = vmatprep.subr.mxu0 0.0
  %1634 = vmatpush1.msra.mxu0 0.0
  %1635 = vmatprep.subr.mxu0 0.0
  %1636 = vmatpush1.msra.mxu0 0.0
  %1637 = vmatprep.subr.mxu0 0.0
  %1638 = vmatpush1.msra.mxu0 0.0
  %1639 = vmatprep.subr.mxu0 0.0
  %1640 = vmatpush1.msra.mxu0 0.0
  %1641 = vmatprep.subr.mxu0 0.0
  %1642 = vmatpush1.msra.mxu0 0.0
  %1643 = vmatprep.subr.mxu0 0.0
  %1644 = vmatpush1.msra.mxu0 0.0
  %1645 = vmatprep.subr.mxu0 0.0
  %1646 = vmatpush1.msra.mxu0 0.0
  %1647 = vmatprep.subr.mxu0 0.0
  %1648 = vmatpush1.msra.mxu0 0.0
  %1649 = vmatprep.subr.mxu0 0.0
  %1650 = vmatpush1.msra.mxu0 0.0
  %1651 = vmatprep.subr.mxu0 0.0
  %1652 = vmatpush1.msra.mxu0 0.0
  %1653 = vmatprep.subr.mxu0 0.0
  %1654 = vmatpush1.msra.mxu0 0.0
  %1655 = vmatprep.subr.mxu0 0.0
  %1656 = vmatpush1.msra.mxu0 0.0
  %1657 = vmatprep.subr.mxu0 0.0
  %1658 = vmatpush1.msra.mxu0 0.0
  %1659 = vmatprep.subr.mxu0 0.0
  %1660 = vmatpush1.msra.mxu0 0.0
  %1661 = vmatprep.subr.mxu0 0.0
  %1662 = vmatpush1.msra.mxu0 0.0
  %1663 = vmatprep.subr.mxu0 0.0
  %1664 = vmatpush1.msra.mxu0 0.0
  %1665 = vmatprep.subr.mxu0 0.0
  %1666 = vmatpush1.msra.mxu0 0.0
  %1667 = vmatprep.subr.mxu0 0.0
  %1668 = vmatpush1.msra.mxu0 0.0
  %1669 = vmatprep.subr.mxu0 0.0
  %1670 = vmatpush1.msra.mxu0 0.0
  %1671 = vmatprep.subr.mxu0 0.0
  %1672 = vmatpush1.msra.mxu0 0.0
  %1673 = vmatprep.subr.mxu0 0.0
  %1674 = vmatpush1.msra.mxu0 0.0
  %1675 = vmatprep.subr.mxu0 0.0
  %1676 = vmatpush1.msra.mxu0 0.0
  %1677 = vmatprep.subr.mxu0 0.0
  %1678 = vmatpush1.msra.mxu0 0.0
  %1679 = vmatprep.subr.mxu0 0.0
  %1680 = vmatpush1.msra.mxu0 0.0
  %1681 = vmatprep.subr.mxu0 0.0
  %1682 = vmatpush1.msra.mxu0 0.0
  %1683 = vmatprep.mubr.f32.mxu0 0.0
  %1684 = vmatmul.mubr.f32.gmra.mrb[0].mxu0 %v1617
  %v1685 = vpop.f32.mrb[0].mxu0
  %v1686 = vadd.f32 0.0, %v1685
  %v1687 = vpop.f32.mrb[0].mxu0
  %1688 = vdwg.mxu0
  %v1689 = vadd.f32 %v1609, %v1686
  %v1690 = vld [vmem:[%s4 + $0x60] sm:$0xff]
  %v1691 = vld [vmem:[%s4 + $0x68] sm:$0xff]
  %v1692 = vld [vmem:[%s4 + $0x70] sm:$0xff]
  %v1693 = vld [vmem:[%s4 + $0x78] sm:$0xff]
  %v1695 = vsel %vm319, %v1455, 0
  %1697 = vmatprep.subr.mxu0 0.0
  %1698 = vmatpush1.msra.mxu0 %v1690
  %1699 = vmatprep.subr.mxu0 0.0
  %1700 = vmatpush1.msra.mxu0 %v1691
  %1701 = vmatprep.subr.mxu0 0.0
  %1702 = vmatpush1.msra.mxu0 %v1692
  %1703 = vmatprep.subr.mxu0 0.0
  %1704 = vmatpush1.msra.mxu0 %v1693
  %1705 = vmatprep.subr.mxu0 0.0
  %1706 = vmatpush1.msra.mxu0 0.0
  %1707 = vmatprep.subr.mxu0 0.0
  %1708 = vmatpush1.msra.mxu0 0.0
  %1709 = vmatprep.subr.mxu0 0.0
  %1710 = vmatpush1.msra.mxu0 0.0
  %1711 = vmatprep.subr.mxu0 0.0
  %1712 = vmatpush1.msra.mxu0 0.0
  %1713 = vmatprep.subr.mxu0 0.0
  %1714 = vmatpush1.msra.mxu0 0.0
  %1715 = vmatprep.subr.mxu0 0.0
  %1716 = vmatpush1.msra.mxu0 0.0
  %1717 = vmatprep.subr.mxu0 0.0
  %1718 = vmatpush1.msra.mxu0 0.0
  %1719 = vmatprep.subr.mxu0 0.0
  %1720 = vmatpush1.msra.mxu0 0.0
  %1721 = vmatprep.subr.mxu0 0.0
  %1722 = vmatpush1.msra.mxu0 0.0
  %1723 = vmatprep.subr.mxu0 0.0
  %1724 = vmatpush1.msra.mxu0 0.0
  %1725 = vmatprep.subr.mxu0 0.0
  %1726 = vmatpush1.msra.mxu0 0.0
  %1727 = vmatprep.subr.mxu0 0.0
  %1728 = vmatpush1.msra.mxu0 0.0
  %1729 = vmatprep.subr.mxu0 0.0
  %1730 = vmatpush1.msra.mxu0 0.0
  %1731 = vmatprep.subr.mxu0 0.0
  %1732 = vmatpush1.msra.mxu0 0.0
  %1733 = vmatprep.subr.mxu0 0.0
  %1734 = vmatpush1.msra.mxu0 0.0
  %1735 = vmatprep.subr.mxu0 0.0
  %1736 = vmatpush1.msra.mxu0 0.0
  %1737 = vmatprep.subr.mxu0 0.0
  %1738 = vmatpush1.msra.mxu0 0.0
  %1739 = vmatprep.subr.mxu0 0.0
  %1740 = vmatpush1.msra.mxu0 0.0
  %1741 = vmatprep.subr.mxu0 0.0
  %1742 = vmatpush1.msra.mxu0 0.0
  %1743 = vmatprep.subr.mxu0 0.0
  %1744 = vmatpush1.msra.mxu0 0.0
  %1745 = vmatprep.subr.mxu0 0.0
  %1746 = vmatpush1.msra.mxu0 0.0
  %1747 = vmatprep.subr.mxu0 0.0
  %1748 = vmatpush1.msra.mxu0 0.0
  %1749 = vmatprep.subr.mxu0 0.0
  %1750 = vmatpush1.msra.mxu0 0.0
  %1751 = vmatprep.subr.mxu0 0.0
  %1752 = vmatpush1.msra.mxu0 0.0
  %1753 = vmatprep.subr.mxu0 0.0
  %1754 = vmatpush1.msra.mxu0 0.0
  %1755 = vmatprep.subr.mxu0 0.0
  %1756 = vmatpush1.msra.mxu0 0.0
  %1757 = vmatprep.subr.mxu0 0.0
  %1758 = vmatpush1.msra.mxu0 0.0
  %1759 = vmatprep.subr.mxu0 0.0
  %1760 = vmatpush1.msra.mxu0 0.0
  %1761 = vmatprep.mubr.f32.mxu0 0.0
  %1762 = vmatmul.mubr.f32.gmra.mrb[0].mxu0 %v1695
  %v1763 = vpop.f32.mrb[0].mxu0
  %v1764 = vadd.f32 0.0, %v1763
  %v1765 = vpop.f32.mrb[0].mxu0
  %1766 = vdwg.mxu0
  %v1767 = vadd.f32 %v1689, %v1764
  %v1768 = vld [vmem:[%s4 + $0x80] sm:$0x1]
  %v1769 = vlaneseq
  %v1770 = vshrl.u32 %v1769, 7
  %v1771 = vsub.s32 0, %v1770
  %v1772 = vrot.slane %v1768, %v1771
  %v1773 = vadd.f32 %v1767, %v1772
  %v1774 = vmax.f32 %v1773, 0.0
  %v1775 = vld [vmem:[%s4 + $0x88] sm:$0x1]
  %v1776 = vlaneseq
  %v1777 = vshrl.u32 %v1776, 7
  %v1778 = vsub.s32 0, %v1777
  %v1779 = vrot.slane %v1775, %v1778
  %v1780 = vmul.f32 %v1774, %v1779
  %1781 = vadd.xlane.f32.xlu0 %v1780
  %v1782 = vpop.xlane.xlu0 %1781
  %v1783 = vld [vmem:[%s4 + $0x90] sm:$0x1]
  %v1784 = vlaneseq
  %v1785 = vshrl.u32 %v1784, 7
  %v1786 = vsub.s32 0, %v1785
  %v1787 = vrot.slane %v1783, %v1786
  %v1788 = vadd.f32 %v1782, %v1787
  %v1789 = vand.u32 2147483647, %v1788
  %vm1790 = vcmask 1024
  %1791 = vst.msk [vmem:[%s5] sm:$0x3] %vm1790, %v1789
  // Predicated region
  $region22: #{buchwald_forward.1} parent=0 // pred_check
    _
  $region23: #{buchwald_forward.1} parent=0 // pred_check_branch
    %1793 = sbr.rel (0) target = $region25
  $region24: #{buchwald_forward.1} parent=0 // pred_region
    _
  $region25: #{buchwald_forward.1} parent=0 // pred_fallthru
    _
  // Predicated region
  $region26: #{buchwald_forward.1} parent=0 // pred_check
    _
  $region27: #{buchwald_forward.1} parent=0 // pred_check_branch
    %1795 = sbr.rel (0) target = $region29
  $region28: #{buchwald_forward.1} parent=0 // pred_region
    _
  $region29: #{buchwald_forward.1} parent=0 // pred_fallthru
    _

</llo_original>
